<compile_context>
chip_gen: v5e
topology: v5e:2x2
jax: 0.10.0
libtpu: 0.0.40
codegen_flags: <defaults>
</compile_context>

<pallas_src>
import jax
import jax.numpy as jnp
from jax import lax
from jax.experimental import pallas as pl
from jax.experimental.pallas import tpu as pltpu
import numpy as np

BN_EPS = 1e-5


def _zero_halo(xpad_ref, Ca, H, W, pad):
    """Zero only the 2*pad halo strips; the interior is overwritten per sample."""
    Hp, Wp = H + 2 * pad, W + 2 * pad
    zrow = jnp.zeros((Ca, pad, Wp), jnp.float32)
    zcol = jnp.zeros((Ca, H, pad), jnp.float32)
    xpad_ref[:, 0:pad, :] = zrow
    xpad_ref[:, pad + H:Hp, :] = zrow
    xpad_ref[:, pad:pad + H, 0:pad] = zcol
    xpad_ref[:, pad:pad + H, pad + W:Wp] = zcol


def _conv_taps(xpad_ref, w_ref, Ca, KH, KW, H, W):
    """SAME conv via KH*KW*Ca shifted-slab loads; each slab feeds all Ca outputs."""
    accs = [jnp.zeros((H, W), jnp.float32) for _ in range(Ca)]
    for ci in range(Ca):
        for kh in range(KH):
            for kw in range(KW):
                # TODO(synk): kw != pad slices are lane-unaligned; pltpu.roll + edge
                # masks would move the column shift onto the (idle) XLU slot.
                slab = xpad_ref[ci, kh:kh + H, kw:kw + W]
                for co in range(Ca):
                    wv = w_ref[((kh * KW + kw) * Ca + ci) * Ca + co]  # SMEM scalar
                    accs[co] = accs[co] + slab * wv
    return accs


def _make_conv_stats_kernel(kernel_size):
    """Pass 1: conv (no bias) + per-block [sum, sum_sq] partial BN stats, stats-only output."""
    KH = KW = kernel_size
    pad = kernel_size // 2

    def kernel(x_ref, w_ref, stats_ref, xpad_ref):
        # x_ref    : (TN, Ca, H, W)        active channels of TN samples (VMEM)
        # w_ref    : (KH*KW*Ca*Ca,) f32    conv weights, flat [kh, kw, ci, co] (SMEM)
        # stats_ref: (1, 2, Ca)      f32   row 0 = sum(conv), row 1 = sum(conv^2)
        # xpad_ref : (Ca, H+2p, W+2p) f32  halo scratch (only strips zeroed here)
        TN, Ca, H, W = x_ref.shape
        _zero_halo(xpad_ref, Ca, H, W, pad)

        s = [jnp.zeros((1, 1), jnp.float32) for _ in range(Ca)]
        s2 = [jnp.zeros((1, 1), jnp.float32) for _ in range(Ca)]
        for n in range(TN):
            xpad_ref[:, pad:pad + H, pad:pad + W] = x_ref[n].astype(jnp.float32)
            accs = _conv_taps(xpad_ref, w_ref, Ca, KH, KW, H, W)
            for co in range(Ca):
                a = accs[co]
                s[co] = s[co] + jnp.sum(jnp.sum(a, axis=1, keepdims=True),
                                        axis=0, keepdims=True)
                s2[co] = s2[co] + jnp.sum(jnp.sum(a * a, axis=1, keepdims=True),
                                          axis=0, keepdims=True)
        for co in range(Ca):
            stats_ref[0, 0:1, co:co + 1] = s[co]
            stats_ref[0, 1:2, co:co + 1] = s2[co]

    return kernel


def _make_conv_bn_relu_kernel(kernel_size):
    """Pass 2: recompute the cheap conv, then y = relu(conv * scale + shift)."""
    KH = KW = kernel_size
    pad = kernel_size // 2

    def kernel(scale_ref, shift_ref, w_ref, x_ref, out_ref, xpad_ref):
        # scale_ref, shift_ref: (Ca,) f32 in SMEM (folded bias/BN affine)
        # x_ref : (TN, Ca, H, W)    out_ref: (TN, Ca, H, W) in the input dtype
        TN, Ca, H, W = x_ref.shape
        _zero_halo(xpad_ref, Ca, H, W, pad)

        for n in range(TN):
            xpad_ref[:, pad:pad + H, pad:pad + W] = x_ref[n].astype(jnp.float32)
            accs = _conv_taps(xpad_ref, w_ref, Ca, KH, KW, H, W)
            for co in range(Ca):
                v = accs[co] * scale_ref[co] + shift_ref[co]
                out_ref[n, co] = jnp.maximum(v, 0.0).astype(out_ref.dtype)

    return kernel


def _pick_block_batch(N, Ca, H, W, itemsize, budget_bytes=2 << 20, max_tn=8):
    """Largest TN that divides N, fits the per-block VMEM budget, and caps unrolling."""
    per_sample = max(Ca * H * W * itemsize, 1)
    tn = max(1, min(N, max_tn, budget_bytes // per_sample))
    while tn > 1 and N % tn != 0:
        tn -= 1
    return int(tn)


def splitsr_block(x_nchw, w_oihw, bias, gamma, beta, alpharatio, kernel_size):
    """Matches SplitSRBlock.forward (NCHW in / NCHW out, BatchNorm in training mode)."""
    N, C, H, W = x_nchw.shape
    Ca = alpharatio
    p = kernel_size // 2

    active = x_nchw[:, :Ca]           # only the active half goes through the kernels
    passive = x_nchw[:, Ca:]          # pure pass-through: concat handled by XLA below

    # PyTorch (out, in, kh, kw) -> flat [kh, kw, ci, co] scalar table for SMEM.
    w_flat = jnp.transpose(w_oihw, (2, 3, 1, 0)).reshape(-1).astype(jnp.float32)

    itemsize = jnp.dtype(x_nchw.dtype).itemsize
    TN = _pick_block_batch(N, Ca, H, W, itemsize)
    num_blocks = N // TN

    # vmem limit from actual double-buffered in+out blocks + halo scratch + headroom.
    blk_bytes = TN * Ca * H * W * itemsize
    scratch_bytes = Ca * (H + 2 * p) * (W + 2 * p) * 4
    need = 4 * blk_bytes + scratch_bytes + (2 << 20)
    vmem_limit = int(min(max(need, 32 << 20), 64 << 20))

    cparams = pltpu.CompilerParams(
        dimension_semantics=("parallel",),   # TODO(synk): CORE_PARALLEL on v7x (2 TCs)
        vmem_limit_bytes=vmem_limit,
    )

    blk = pl.BlockSpec((TN, Ca, H, W), lambda n: (n, 0, 0, 0))
    smem = pl.BlockSpec(memory_space=pltpu.MemorySpace.SMEM)
    scratch = [pltpu.VMEM((Ca, H + 2 * p, W + 2 * p), jnp.float32)]

    # Pass 1: per-block partial BN stats only (no conv tensor written to HBM).
    stats = pl.pallas_call(
        _make_conv_stats_kernel(kernel_size),
        grid=(num_blocks,),
        in_specs=[blk, smem],
        out_specs=pl.BlockSpec((1, 2, Ca), lambda n: (n, 0, 0)),
        out_shape=jax.ShapeDtypeStruct((num_blocks, 2, Ca), jnp.float32),
        scratch_shapes=scratch,
        compiler_params=cparams,
    )(active, w_flat)

    # Combine block partials into training-mode batch stats and fold conv-bias + BN
    # (biased variance) into one per-channel scale/shift.
    # TODO(synk): Welford-style combine if sum_sq cancellation ever matters.
    M = N * H * W
    mean_conv = jnp.sum(stats[:, 0, :], axis=0) / M
    var = jnp.maximum(jnp.sum(stats[:, 1, :], axis=0) / M - mean_conv * mean_conv, 0.0)
    mean_z = mean_conv + bias                  # mean of (conv + bias); var is bias-invariant
    scale = gamma * lax.rsqrt(var + BN_EPS)
    shift = beta + (bias - mean_z) * scale     # y = relu(conv_nobias * scale + shift)

    # Pass 2: recompute the 36-MAC conv (hidden under the x reload) + fused BN/ReLU.
    active_out = pl.pallas_call(
        _make_conv_bn_relu_kernel(kernel_size),
        grid=(num_blocks,),
        in_specs=[smem, smem, smem, blk],
        out_specs=blk,
        out_shape=jax.ShapeDtypeStruct((N, Ca, H, W), x_nchw.dtype),
        scratch_shapes=scratch,
        compiler_params=cparams,
    )(scale.astype(jnp.float32), shift.astype(jnp.float32), w_flat, active)

    # Channel concat done by XLA: passive never touches VMEM / the TensorCore.
    return jnp.concatenate([passive, active_out], axis=1)


def splitsr_reference(x, w, bias, gamma, beta, alpharatio, kernel_size):
    """Pure-JAX reference mirroring the PyTorch module (BatchNorm in training mode)."""
    Ca = alpharatio
    p = kernel_size // 2
    active, passive = x[:, :Ca], x[:, Ca:]
    conv = lax.conv_general_dilated(
        active, w, window_strides=(1, 1), padding=[(p, p), (p, p)],
        dimension_numbers=("NCHW", "OIHW", "NCHW"),
    ) + bias[None, :, None, None]
    mean = conv.mean(axis=(0, 2, 3), keepdims=True)
    var = jnp.mean(jnp.square(conv - mean), axis=(0, 2, 3), keepdims=True)
    act = (conv - mean) * lax.rsqrt(var + BN_EPS)
    act = act * gamma[None, :, None, None] + beta[None, :, None, None]
    act = jnp.maximum(act, 0.0)
    return jnp.concatenate([passive, act], axis=1)


if __name__ == "__main__":
    # Module config: channels=4, kernel=3, alpha=0.5 -> alpharatio=2
    channels, kernel_size, alpha = 4, 3, 0.5
    alpharatio = int(channels * alpha)
    N, H, W = 2, 16, 16

    key = jax.random.PRNGKey(0)
    kx, kw, kb, kg, kbt = jax.random.split(key, 5)

    x = jax.random.normal(kx, (N, channels, H, W), dtype=jnp.float32)
    conv_w = 0.1 * jax.random.normal(kw, (alpharatio, alpharatio, kernel_size, kernel_size),
                                     dtype=jnp.float32)
    conv_b = 0.1 * jax.random.normal(kb, (alpharatio,), dtype=jnp.float32)
    bn_gamma = 1.0 + 0.1 * jax.random.normal(kg, (alpharatio,), dtype=jnp.float32)
    bn_beta = 0.1 * jax.random.normal(kbt, (alpharatio,), dtype=jnp.float32)

    out = splitsr_block(x, conv_w, conv_b, bn_gamma, bn_beta, alpharatio, kernel_size)
    out = jax.block_until_ready(out)

    ref = splitsr_reference(x, conv_w, conv_b, bn_gamma, bn_beta, alpharatio, kernel_size)
    np.testing.assert_allclose(np.asarray(out), np.asarray(ref), rtol=1e-4, atol=1e-4)

    print("KERNEL_OK")
</pallas_src>

<mosaic_0001>
module attributes {stable_mosaic.version = 11 : i64} {
  func.func @kernel(%arg0: i32, %arg1: memref<2x2x16x16xf32, #tpu.memory_space<vmem>>, %arg2: memref<36xf32, #tpu.memory_space<smem>>, %arg3: memref<1x2x2xf32, #tpu.memory_space<vmem>>, %arg4: memref<2x18x18xf32, #tpu.memory_space<vmem>>) attributes {dimension_semantics = [#tpu.dimension_semantics<parallel>], iteration_bounds = array<i64: 1>, scalar_prefetch = 0 : i64, scratch_operands = 1 : i64, tpu.core_type = #tpu.core_type<tc>, window_params = [{transform_indices = @transform_0, window_bounds = array<i64: 2, 2, 16, 16>}, {transform_indices = @transform_1, window_bounds = array<i64: 36>}, {transform_indices = @transform_2, window_bounds = array<i64: 1, 2, 2>}]} {
    %cst = arith.constant 0.000000e+00 : f32
    %0 = vector.broadcast %cst : f32 to vector<2x1x18xf32>
    %cst_0 = arith.constant 0.000000e+00 : f32
    %1 = vector.broadcast %cst_0 : f32 to vector<2x16x1xf32>
    %c0 = arith.constant 0 : index
    %c0_1 = arith.constant 0 : index
    %c0_2 = arith.constant 0 : index
    %2 = vector.load %arg4[%c0, %c0_1, %c0_2] : memref<2x18x18xf32, #tpu.memory_space<vmem>>, vector<2x1x18xf32>
    tpu.vector_store %arg4[%c0, %c0_1, %c0_2], %0 {strides = array<i32>} : memref<2x18x18xf32, #tpu.memory_space<vmem>>, vector<2x1x18xf32>,
    %c0_3 = arith.constant 0 : index
    %c17 = arith.constant 17 : index
    %c0_4 = arith.constant 0 : index
    %3 = vector.load %arg4[%c0_3, %c17, %c0_4] : memref<2x18x18xf32, #tpu.memory_space<vmem>>, vector<2x1x18xf32>
    tpu.vector_store %arg4[%c0_3, %c17, %c0_4], %0 {strides = array<i32>} : memref<2x18x18xf32, #tpu.memory_space<vmem>>, vector<2x1x18xf32>,
    %c0_5 = arith.constant 0 : index
    %c1 = arith.constant 1 : index
    %c0_6 = arith.constant 0 : index
    %4 = vector.load %arg4[%c0_5, %c1, %c0_6] : memref<2x18x18xf32, #tpu.memory_space<vmem>>, vector<2x16x1xf32>
    tpu.vector_store %arg4[%c0_5, %c1, %c0_6], %1 {strides = array<i32>} : memref<2x18x18xf32, #tpu.memory_space<vmem>>, vector<2x16x1xf32>,
    %c0_7 = arith.constant 0 : index
    %c1_8 = arith.constant 1 : index
    %c17_9 = arith.constant 17 : index
    %5 = vector.load %arg4[%c0_7, %c1_8, %c17_9] : memref<2x18x18xf32, #tpu.memory_space<vmem>>, vector<2x16x1xf32>
    tpu.vector_store %arg4[%c0_7, %c1_8, %c17_9], %1 {strides = array<i32>} : memref<2x18x18xf32, #tpu.memory_space<vmem>>, vector<2x16x1xf32>,
    %cst_10 = arith.constant 0.000000e+00 : f32
    %6 = vector.broadcast %cst_10 : f32 to vector<1x1xf32>
    %cst_11 = arith.constant 0.000000e+00 : f32
    %7 = vector.broadcast %cst_11 : f32 to vector<1x1xf32>
    %cst_12 = arith.constant 0.000000e+00 : f32
    %8 = vector.broadcast %cst_12 : f32 to vector<1x1xf32>
    %cst_13 = arith.constant 0.000000e+00 : f32
    %9 = vector.broadcast %cst_13 : f32 to vector<1x1xf32>
    %c0_14 = arith.constant 0 : index
    %c0_15 = arith.constant 0 : index
    %c0_16 = arith.constant 0 : index
    %c0_17 = arith.constant 0 : index
    %10 = vector.load %arg1[%c0_14, %c0_15, %c0_16, %c0_17] : memref<2x2x16x16xf32, #tpu.memory_space<vmem>>, vector<1x2x16x16xf32>
    %11 = vector.shape_cast %10 : vector<1x2x16x16xf32> to vector<2x16x16xf32>
    %c0_18 = arith.constant 0 : index
    %c1_19 = arith.constant 1 : index
    %c1_20 = arith.constant 1 : index
    %12 = vector.load %arg4[%c0_18, %c1_19, %c1_20] : memref<2x18x18xf32, #tpu.memory_space<vmem>>, vector<2x16x16xf32>
    tpu.vector_store %arg4[%c0_18, %c1_19, %c1_20], %11 {strides = array<i32>} : memref<2x18x18xf32, #tpu.memory_space<vmem>>, vector<2x16x16xf32>,
    %cst_21 = arith.constant 0.000000e+00 : f32
    %13 = vector.broadcast %cst_21 : f32 to vector<16x16xf32>
    %cst_22 = arith.constant 0.000000e+00 : f32
    %14 = vector.broadcast %cst_22 : f32 to vector<16x16xf32>
    %c0_23 = arith.constant 0 : index
    %c0_24 = arith.constant 0 : index
    %c0_25 = arith.constant 0 : index
    %15 = vector.load %arg4[%c0_23, %c0_24, %c0_25] : memref<2x18x18xf32, #tpu.memory_space<vmem>>, vector<1x16x16xf32>
    %16 = vector.shape_cast %15 : vector<1x16x16xf32> to vector<16x16xf32>
    %c0_26 = arith.constant 0 : index
    %17 = memref.load %arg2[%c0_26] : memref<36xf32, #tpu.memory_space<smem>>
    %18 = vector.broadcast %17 : f32 to vector<16x16xf32>
    %19 = arith.mulf %16, %18 : vector<16x16xf32>
    %20 = arith.addf %13, %19 : vector<16x16xf32>
    %c1_27 = arith.constant 1 : index
    %21 = memref.load %arg2[%c1_27] : memref<36xf32, #tpu.memory_space<smem>>
    %22 = vector.broadcast %21 : f32 to vector<16x16xf32>
    %23 = arith.mulf %16, %22 : vector<16x16xf32>
    %24 = arith.addf %14, %23 : vector<16x16xf32>
    %c0_28 = arith.constant 0 : index
    %c0_29 = arith.constant 0 : index
    %c1_30 = arith.constant 1 : index
    %25 = vector.load %arg4[%c0_28, %c0_29, %c1_30] : memref<2x18x18xf32, #tpu.memory_space<vmem>>, vector<1x16x16xf32>
    %26 = vector.shape_cast %25 : vector<1x16x16xf32> to vector<16x16xf32>
    %c4 = arith.constant 4 : index
    %27 = memref.load %arg2[%c4] : memref<36xf32, #tpu.memory_space<smem>>
    %28 = vector.broadcast %27 : f32 to vector<16x16xf32>
    %29 = arith.mulf %26, %28 : vector<16x16xf32>
    %30 = arith.addf %20, %29 : vector<16x16xf32>
    %c5 = arith.constant 5 : index
    %31 = memref.load %arg2[%c5] : memref<36xf32, #tpu.memory_space<smem>>
    %32 = vector.broadcast %31 : f32 to vector<16x16xf32>
    %33 = arith.mulf %26, %32 : vector<16x16xf32>
    %34 = arith.addf %24, %33 : vector<16x16xf32>
    %c0_31 = arith.constant 0 : index
    %c0_32 = arith.constant 0 : index
    %c2 = arith.constant 2 : index
    %35 = vector.load %arg4[%c0_31, %c0_32, %c2] : memref<2x18x18xf32, #tpu.memory_space<vmem>>, vector<1x16x16xf32>
    %36 = vector.shape_cast %35 : vector<1x16x16xf32> to vector<16x16xf32>
    %c8 = arith.constant 8 : index
    %37 = memref.load %arg2[%c8] : memref<36xf32, #tpu.memory_space<smem>>
    %38 = vector.broadcast %37 : f32 to vector<16x16xf32>
    %39 = arith.mulf %36, %38 : vector<16x16xf32>
    %40 = arith.addf %30, %39 : vector<16x16xf32>
    %c9 = arith.constant 9 : index
    %41 = memref.load %arg2[%c9] : memref<36xf32, #tpu.memory_space<smem>>
    %42 = vector.broadcast %41 : f32 to vector<16x16xf32>
    %43 = arith.mulf %36, %42 : vector<16x16xf32>
    %44 = arith.addf %34, %43 : vector<16x16xf32>
    %c0_33 = arith.constant 0 : index
    %c1_34 = arith.constant 1 : index
    %c0_35 = arith.constant 0 : index
    %45 = vector.load %arg4[%c0_33, %c1_34, %c0_35] : memref<2x18x18xf32, #tpu.memory_space<vmem>>, vector<1x16x16xf32>
    %46 = vector.shape_cast %45 : vector<1x16x16xf32> to vector<16x16xf32>
    %c12 = arith.constant 12 : index
    %47 = memref.load %arg2[%c12] : memref<36xf32, #tpu.memory_space<smem>>
    %48 = vector.broadcast %47 : f32 to vector<16x16xf32>
    %49 = arith.mulf %46, %48 : vector<16x16xf32>
    %50 = arith.addf %40, %49 : vector<16x16xf32>
    %c13 = arith.constant 13 : index
    %51 = memref.load %arg2[%c13] : memref<36xf32, #tpu.memory_space<smem>>
    %52 = vector.broadcast %51 : f32 to vector<16x16xf32>
    %53 = arith.mulf %46, %52 : vector<16x16xf32>
    %54 = arith.addf %44, %53 : vector<16x16xf32>
    %c0_36 = arith.constant 0 : index
    %c1_37 = arith.constant 1 : index
    %c1_38 = arith.constant 1 : index
    %55 = vector.load %arg4[%c0_36, %c1_37, %c1_38] : memref<2x18x18xf32, #tpu.memory_space<vmem>>, vector<1x16x16xf32>
    %56 = vector.shape_cast %55 : vector<1x16x16xf32> to vector<16x16xf32>
    %c16 = arith.constant 16 : index
    %57 = memref.load %arg2[%c16] : memref<36xf32, #tpu.memory_space<smem>>
    %58 = vector.broadcast %57 : f32 to vector<16x16xf32>
    %59 = arith.mulf %56, %58 : vector<16x16xf32>
    %60 = arith.addf %50, %59 : vector<16x16xf32>
    %c17_39 = arith.constant 17 : index
    %61 = memref.load %arg2[%c17_39] : memref<36xf32, #tpu.memory_space<smem>>
    %62 = vector.broadcast %61 : f32 to vector<16x16xf32>
    %63 = arith.mulf %56, %62 : vector<16x16xf32>
    %64 = arith.addf %54, %63 : vector<16x16xf32>
    %c0_40 = arith.constant 0 : index
    %c1_41 = arith.constant 1 : index
    %c2_42 = arith.constant 2 : index
    %65 = vector.load %arg4[%c0_40, %c1_41, %c2_42] : memref<2x18x18xf32, #tpu.memory_space<vmem>>, vector<1x16x16xf32>
    %66 = vector.shape_cast %65 : vector<1x16x16xf32> to vector<16x16xf32>
    %c20 = arith.constant 20 : index
    %67 = memref.load %arg2[%c20] : memref<36xf32, #tpu.memory_space<smem>>
    %68 = vector.broadcast %67 : f32 to vector<16x16xf32>
    %69 = arith.mulf %66, %68 : vector<16x16xf32>
    %70 = arith.addf %60, %69 : vector<16x16xf32>
    %c21 = arith.constant 21 : index
    %71 = memref.load %arg2[%c21] : memref<36xf32, #tpu.memory_space<smem>>
    %72 = vector.broadcast %71 : f32 to vector<16x16xf32>
    %73 = arith.mulf %66, %72 : vector<16x16xf32>
    %74 = arith.addf %64, %73 : vector<16x16xf32>
    %c0_43 = arith.constant 0 : index
    %c2_44 = arith.constant 2 : index
    %c0_45 = arith.constant 0 : index
    %75 = vector.load %arg4[%c0_43, %c2_44, %c0_45] : memref<2x18x18xf32, #tpu.memory_space<vmem>>, vector<1x16x16xf32>
    %76 = vector.shape_cast %75 : vector<1x16x16xf32> to vector<16x16xf32>
    %c24 = arith.constant 24 : index
    %77 = memref.load %arg2[%c24] : memref<36xf32, #tpu.memory_space<smem>>
    %78 = vector.broadcast %77 : f32 to vector<16x16xf32>
    %79 = arith.mulf %76, %78 : vector<16x16xf32>
    %80 = arith.addf %70, %79 : vector<16x16xf32>
    %c25 = arith.constant 25 : index
    %81 = memref.load %arg2[%c25] : memref<36xf32, #tpu.memory_space<smem>>
    %82 = vector.broadcast %81 : f32 to vector<16x16xf32>
    %83 = arith.mulf %76, %82 : vector<16x16xf32>
    %84 = arith.addf %74, %83 : vector<16x16xf32>
    %c0_46 = arith.constant 0 : index
    %c2_47 = arith.constant 2 : index
    %c1_48 = arith.constant 1 : index
    %85 = vector.load %arg4[%c0_46, %c2_47, %c1_48] : memref<2x18x18xf32, #tpu.memory_space<vmem>>, vector<1x16x16xf32>
    %86 = vector.shape_cast %85 : vector<1x16x16xf32> to vector<16x16xf32>
    %c28 = arith.constant 28 : index
    %87 = memref.load %arg2[%c28] : memref<36xf32, #tpu.memory_space<smem>>
    %88 = vector.broadcast %87 : f32 to vector<16x16xf32>
    %89 = arith.mulf %86, %88 : vector<16x16xf32>
    %90 = arith.addf %80, %89 : vector<16x16xf32>
    %c29 = arith.constant 29 : index
    %91 = memref.load %arg2[%c29] : memref<36xf32, #tpu.memory_space<smem>>
    %92 = vector.broadcast %91 : f32 to vector<16x16xf32>
    %93 = arith.mulf %86, %92 : vector<16x16xf32>
    %94 = arith.addf %84, %93 : vector<16x16xf32>
    %c0_49 = arith.constant 0 : index
    %c2_50 = arith.constant 2 : index
    %c2_51 = arith.constant 2 : index
    %95 = vector.load %arg4[%c0_49, %c2_50, %c2_51] : memref<2x18x18xf32, #tpu.memory_space<vmem>>, vector<1x16x16xf32>
    %96 = vector.shape_cast %95 : vector<1x16x16xf32> to vector<16x16xf32>
    %c32 = arith.constant 32 : index
    %97 = memref.load %arg2[%c32] : memref<36xf32, #tpu.memory_space<smem>>
    %98 = vector.broadcast %97 : f32 to vector<16x16xf32>
    %99 = arith.mulf %96, %98 : vector<16x16xf32>
    %100 = arith.addf %90, %99 : vector<16x16xf32>
    %c33 = arith.constant 33 : index
    %101 = memref.load %arg2[%c33] : memref<36xf32, #tpu.memory_space<smem>>
    %102 = vector.broadcast %101 : f32 to vector<16x16xf32>
    %103 = arith.mulf %96, %102 : vector<16x16xf32>
    %104 = arith.addf %94, %103 : vector<16x16xf32>
    %c1_52 = arith.constant 1 : index
    %c0_53 = arith.constant 0 : index
    %c0_54 = arith.constant 0 : index
    %105 = vector.load %arg4[%c1_52, %c0_53, %c0_54] : memref<2x18x18xf32, #tpu.memory_space<vmem>>, vector<1x16x16xf32>
    %106 = vector.shape_cast %105 : vector<1x16x16xf32> to vector<16x16xf32>
    %c2_55 = arith.constant 2 : index
    %107 = memref.load %arg2[%c2_55] : memref<36xf32, #tpu.memory_space<smem>>
    %108 = vector.broadcast %107 : f32 to vector<16x16xf32>
    %109 = arith.mulf %106, %108 : vector<16x16xf32>
    %110 = arith.addf %100, %109 : vector<16x16xf32>
    %c3 = arith.constant 3 : index
    %111 = memref.load %arg2[%c3] : memref<36xf32, #tpu.memory_space<smem>>
    %112 = vector.broadcast %111 : f32 to vector<16x16xf32>
    %113 = arith.mulf %106, %112 : vector<16x16xf32>
    %114 = arith.addf %104, %113 : vector<16x16xf32>
    %c1_56 = arith.constant 1 : index
    %c0_57 = arith.constant 0 : index
    %c1_58 = arith.constant 1 : index
    %115 = vector.load %arg4[%c1_56, %c0_57, %c1_58] : memref<2x18x18xf32, #tpu.memory_space<vmem>>, vector<1x16x16xf32>
    %116 = vector.shape_cast %115 : vector<1x16x16xf32> to vector<16x16xf32>
    %c6 = arith.constant 6 : index
    %117 = memref.load %arg2[%c6] : memref<36xf32, #tpu.memory_space<smem>>
    %118 = vector.broadcast %117 : f32 to vector<16x16xf32>
    %119 = arith.mulf %116, %118 : vector<16x16xf32>
    %120 = arith.addf %110, %119 : vector<16x16xf32>
    %c7 = arith.constant 7 : index
    %121 = memref.load %arg2[%c7] : memref<36xf32, #tpu.memory_space<smem>>
    %122 = vector.broadcast %121 : f32 to vector<16x16xf32>
    %123 = arith.mulf %116, %122 : vector<16x16xf32>
    %124 = arith.addf %114, %123 : vector<16x16xf32>
    %c1_59 = arith.constant 1 : index
    %c0_60 = arith.constant 0 : index
    %c2_61 = arith.constant 2 : index
    %125 = vector.load %arg4[%c1_59, %c0_60, %c2_61] : memref<2x18x18xf32, #tpu.memory_space<vmem>>, vector<1x16x16xf32>
    %126 = vector.shape_cast %125 : vector<1x16x16xf32> to vector<16x16xf32>
    %c10 = arith.constant 10 : index
    %127 = memref.load %arg2[%c10] : memref<36xf32, #tpu.memory_space<smem>>
    %128 = vector.broadcast %127 : f32 to vector<16x16xf32>
    %129 = arith.mulf %126, %128 : vector<16x16xf32>
    %130 = arith.addf %120, %129 : vector<16x16xf32>
    %c11 = arith.constant 11 : index
    %131 = memref.load %arg2[%c11] : memref<36xf32, #tpu.memory_space<smem>>
    %132 = vector.broadcast %131 : f32 to vector<16x16xf32>
    %133 = arith.mulf %126, %132 : vector<16x16xf32>
    %134 = arith.addf %124, %133 : vector<16x16xf32>
    %c1_62 = arith.constant 1 : index
    %c1_63 = arith.constant 1 : index
    %c0_64 = arith.constant 0 : index
    %135 = vector.load %arg4[%c1_62, %c1_63, %c0_64] : memref<2x18x18xf32, #tpu.memory_space<vmem>>, vector<1x16x16xf32>
    %136 = vector.shape_cast %135 : vector<1x16x16xf32> to vector<16x16xf32>
    %c14 = arith.constant 14 : index
    %137 = memref.load %arg2[%c14] : memref<36xf32, #tpu.memory_space<smem>>
    %138 = vector.broadcast %137 : f32 to vector<16x16xf32>
    %139 = arith.mulf %136, %138 : vector<16x16xf32>
    %140 = arith.addf %130, %139 : vector<16x16xf32>
    %c15 = arith.constant 15 : index
    %141 = memref.load %arg2[%c15] : memref<36xf32, #tpu.memory_space<smem>>
    %142 = vector.broadcast %141 : f32 to vector<16x16xf32>
    %143 = arith.mulf %136, %142 : vector<16x16xf32>
    %144 = arith.addf %134, %143 : vector<16x16xf32>
    %c1_65 = arith.constant 1 : index
    %c1_66 = arith.constant 1 : index
    %c1_67 = arith.constant 1 : index
    %145 = vector.load %arg4[%c1_65, %c1_66, %c1_67] : memref<2x18x18xf32, #tpu.memory_space<vmem>>, vector<1x16x16xf32>
    %146 = vector.shape_cast %145 : vector<1x16x16xf32> to vector<16x16xf32>
    %c18 = arith.constant 18 : index
    %147 = memref.load %arg2[%c18] : memref<36xf32, #tpu.memory_space<smem>>
    %148 = vector.broadcast %147 : f32 to vector<16x16xf32>
    %149 = arith.mulf %146, %148 : vector<16x16xf32>
    %150 = arith.addf %140, %149 : vector<16x16xf32>
    %c19 = arith.constant 19 : index
    %151 = memref.load %arg2[%c19] : memref<36xf32, #tpu.memory_space<smem>>
    %152 = vector.broadcast %151 : f32 to vector<16x16xf32>
    %153 = arith.mulf %146, %152 : vector<16x16xf32>
    %154 = arith.addf %144, %153 : vector<16x16xf32>
    %c1_68 = arith.constant 1 : index
    %c1_69 = arith.constant 1 : index
    %c2_70 = arith.constant 2 : index
    %155 = vector.load %arg4[%c1_68, %c1_69, %c2_70] : memref<2x18x18xf32, #tpu.memory_space<vmem>>, vector<1x16x16xf32>
    %156 = vector.shape_cast %155 : vector<1x16x16xf32> to vector<16x16xf32>
    %c22 = arith.constant 22 : index
    %157 = memref.load %arg2[%c22] : memref<36xf32, #tpu.memory_space<smem>>
    %158 = vector.broadcast %157 : f32 to vector<16x16xf32>
    %159 = arith.mulf %156, %158 : vector<16x16xf32>
    %160 = arith.addf %150, %159 : vector<16x16xf32>
    %c23 = arith.constant 23 : index
    %161 = memref.load %arg2[%c23] : memref<36xf32, #tpu.memory_space<smem>>
    %162 = vector.broadcast %161 : f32 to vector<16x16xf32>
    %163 = arith.mulf %156, %162 : vector<16x16xf32>
    %164 = arith.addf %154, %163 : vector<16x16xf32>
    %c1_71 = arith.constant 1 : index
    %c2_72 = arith.constant 2 : index
    %c0_73 = arith.constant 0 : index
    %165 = vector.load %arg4[%c1_71, %c2_72, %c0_73] : memref<2x18x18xf32, #tpu.memory_space<vmem>>, vector<1x16x16xf32>
    %166 = vector.shape_cast %165 : vector<1x16x16xf32> to vector<16x16xf32>
    %c26 = arith.constant 26 : index
    %167 = memref.load %arg2[%c26] : memref<36xf32, #tpu.memory_space<smem>>
    %168 = vector.broadcast %167 : f32 to vector<16x16xf32>
    %169 = arith.mulf %166, %168 : vector<16x16xf32>
    %170 = arith.addf %160, %169 : vector<16x16xf32>
    %c27 = arith.constant 27 : index
    %171 = memref.load %arg2[%c27] : memref<36xf32, #tpu.memory_space<smem>>
    %172 = vector.broadcast %171 : f32 to vector<16x16xf32>
    %173 = arith.mulf %166, %172 : vector<16x16xf32>
    %174 = arith.addf %164, %173 : vector<16x16xf32>
    %c1_74 = arith.constant 1 : index
    %c2_75 = arith.constant 2 : index
    %c1_76 = arith.constant 1 : index
    %175 = vector.load %arg4[%c1_74, %c2_75, %c1_76] : memref<2x18x18xf32, #tpu.memory_space<vmem>>, vector<1x16x16xf32>
    %176 = vector.shape_cast %175 : vector<1x16x16xf32> to vector<16x16xf32>
    %c30 = arith.constant 30 : index
    %177 = memref.load %arg2[%c30] : memref<36xf32, #tpu.memory_space<smem>>
    %178 = vector.broadcast %177 : f32 to vector<16x16xf32>
    %179 = arith.mulf %176, %178 : vector<16x16xf32>
    %180 = arith.addf %170, %179 : vector<16x16xf32>
    %c31 = arith.constant 31 : index
    %181 = memref.load %arg2[%c31] : memref<36xf32, #tpu.memory_space<smem>>
    %182 = vector.broadcast %181 : f32 to vector<16x16xf32>
    %183 = arith.mulf %176, %182 : vector<16x16xf32>
    %184 = arith.addf %174, %183 : vector<16x16xf32>
    %c1_77 = arith.constant 1 : index
    %c2_78 = arith.constant 2 : index
    %c2_79 = arith.constant 2 : index
    %185 = vector.load %arg4[%c1_77, %c2_78, %c2_79] : memref<2x18x18xf32, #tpu.memory_space<vmem>>, vector<1x16x16xf32>
    %186 = vector.shape_cast %185 : vector<1x16x16xf32> to vector<16x16xf32>
    %c34 = arith.constant 34 : index
    %187 = memref.load %arg2[%c34] : memref<36xf32, #tpu.memory_space<smem>>
    %188 = vector.broadcast %187 : f32 to vector<16x16xf32>
    %189 = arith.mulf %186, %188 : vector<16x16xf32>
    %190 = arith.addf %180, %189 : vector<16x16xf32>
    %c35 = arith.constant 35 : index
    %191 = memref.load %arg2[%c35] : memref<36xf32, #tpu.memory_space<smem>>
    %192 = vector.broadcast %191 : f32 to vector<16x16xf32>
    %193 = arith.mulf %186, %192 : vector<16x16xf32>
    %194 = arith.addf %184, %193 : vector<16x16xf32>
    %cst_80 = arith.constant dense<0.000000e+00> : vector<16xf32>
    %195 = vector.multi_reduction <add>, %190, %cst_80 [1] : vector<16x16xf32> to vector<16xf32>
    %196 = vector.shape_cast %195 : vector<16xf32> to vector<16x1xf32>
    %cst_81 = arith.constant dense<0.000000e+00> : vector<1xf32>
    %197 = vector.multi_reduction <add>, %196, %cst_81 [0] : vector<16x1xf32> to vector<1xf32>
    %198 = vector.shape_cast %197 : vector<1xf32> to vector<1x1xf32>
    %199 = arith.addf %6, %198 : vector<1x1xf32>
    %200 = arith.mulf %190, %190 : vector<16x16xf32>
    %cst_82 = arith.constant dense<0.000000e+00> : vector<16xf32>
    %201 = vector.multi_reduction <add>, %200, %cst_82 [1] : vector<16x16xf32> to vector<16xf32>
    %202 = vector.shape_cast %201 : vector<16xf32> to vector<16x1xf32>
    %cst_83 = arith.constant dense<0.000000e+00> : vector<1xf32>
    %203 = vector.multi_reduction <add>, %202, %cst_83 [0] : vector<16x1xf32> to vector<1xf32>
    %204 = vector.shape_cast %203 : vector<1xf32> to vector<1x1xf32>
    %205 = arith.addf %8, %204 : vector<1x1xf32>
    %cst_84 = arith.constant dense<0.000000e+00> : vector<16xf32>
    %206 = vector.multi_reduction <add>, %194, %cst_84 [1] : vector<16x16xf32> to vector<16xf32>
    %207 = vector.shape_cast %206 : vector<16xf32> to vector<16x1xf32>
    %cst_85 = arith.constant dense<0.000000e+00> : vector<1xf32>
    %208 = vector.multi_reduction <add>, %207, %cst_85 [0] : vector<16x1xf32> to vector<1xf32>
    %209 = vector.shape_cast %208 : vector<1xf32> to vector<1x1xf32>
    %210 = arith.addf %7, %209 : vector<1x1xf32>
    %211 = arith.mulf %194, %194 : vector<16x16xf32>
    %cst_86 = arith.constant dense<0.000000e+00> : vector<16xf32>
    %212 = vector.multi_reduction <add>, %211, %cst_86 [1] : vector<16x16xf32> to vector<16xf32>
    %213 = vector.shape_cast %212 : vector<16xf32> to vector<16x1xf32>
    %cst_87 = arith.constant dense<0.000000e+00> : vector<1xf32>
    %214 = vector.multi_reduction <add>, %213, %cst_87 [0] : vector<16x1xf32> to vector<1xf32>
    %215 = vector.shape_cast %214 : vector<1xf32> to vector<1x1xf32>
    %216 = arith.addf %9, %215 : vector<1x1xf32>
    %c1_88 = arith.constant 1 : index
    %c0_89 = arith.constant 0 : index
    %c0_90 = arith.constant 0 : index
    %c0_91 = arith.constant 0 : index
    %217 = vector.load %arg1[%c1_88, %c0_89, %c0_90, %c0_91] : memref<2x2x16x16xf32, #tpu.memory_space<vmem>>, vector<1x2x16x16xf32>
    %218 = vector.shape_cast %217 : vector<1x2x16x16xf32> to vector<2x16x16xf32>
    %c0_92 = arith.constant 0 : index
    %c1_93 = arith.constant 1 : index
    %c1_94 = arith.constant 1 : index
    %219 = vector.load %arg4[%c0_92, %c1_93, %c1_94] : memref<2x18x18xf32, #tpu.memory_space<vmem>>, vector<2x16x16xf32>
    tpu.vector_store %arg4[%c0_92, %c1_93, %c1_94], %218 {strides = array<i32>} : memref<2x18x18xf32, #tpu.memory_space<vmem>>, vector<2x16x16xf32>,
    %cst_95 = arith.constant 0.000000e+00 : f32
    %220 = vector.broadcast %cst_95 : f32 to vector<16x16xf32>
    %cst_96 = arith.constant 0.000000e+00 : f32
    %221 = vector.broadcast %cst_96 : f32 to vector<16x16xf32>
    %c0_97 = arith.constant 0 : index
    %c0_98 = arith.constant 0 : index
    %c0_99 = arith.constant 0 : index
    %222 = vector.load %arg4[%c0_97, %c0_98, %c0_99] : memref<2x18x18xf32, #tpu.memory_space<vmem>>, vector<1x16x16xf32>
    %223 = vector.shape_cast %222 : vector<1x16x16xf32> to vector<16x16xf32>
    %c0_100 = arith.constant 0 : index
    %224 = memref.load %arg2[%c0_100] : memref<36xf32, #tpu.memory_space<smem>>
    %225 = vector.broadcast %224 : f32 to vector<16x16xf32>
    %226 = arith.mulf %223, %225 : vector<16x16xf32>
    %227 = arith.addf %220, %226 : vector<16x16xf32>
    %c1_101 = arith.constant 1 : index
    %228 = memref.load %arg2[%c1_101] : memref<36xf32, #tpu.memory_space<smem>>
    %229 = vector.broadcast %228 : f32 to vector<16x16xf32>
    %230 = arith.mulf %223, %229 : vector<16x16xf32>
    %231 = arith.addf %221, %230 : vector<16x16xf32>
    %c0_102 = arith.constant 0 : index
    %c0_103 = arith.constant 0 : index
    %c1_104 = arith.constant 1 : index
    %232 = vector.load %arg4[%c0_102, %c0_103, %c1_104] : memref<2x18x18xf32, #tpu.memory_space<vmem>>, vector<1x16x16xf32>
    %233 = vector.shape_cast %232 : vector<1x16x16xf32> to vector<16x16xf32>
    %c4_105 = arith.constant 4 : index
    %234 = memref.load %arg2[%c4_105] : memref<36xf32, #tpu.memory_space<smem>>
    %235 = vector.broadcast %234 : f32 to vector<16x16xf32>
    %236 = arith.mulf %233, %235 : vector<16x16xf32>
    %237 = arith.addf %227, %236 : vector<16x16xf32>
    %c5_106 = arith.constant 5 : index
    %238 = memref.load %arg2[%c5_106] : memref<36xf32, #tpu.memory_space<smem>>
    %239 = vector.broadcast %238 : f32 to vector<16x16xf32>
    %240 = arith.mulf %233, %239 : vector<16x16xf32>
    %241 = arith.addf %231, %240 : vector<16x16xf32>
    %c0_107 = arith.constant 0 : index
    %c0_108 = arith.constant 0 : index
    %c2_109 = arith.constant 2 : index
    %242 = vector.load %arg4[%c0_107, %c0_108, %c2_109] : memref<2x18x18xf32, #tpu.memory_space<vmem>>, vector<1x16x16xf32>
    %243 = vector.shape_cast %242 : vector<1x16x16xf32> to vector<16x16xf32>
    %c8_110 = arith.constant 8 : index
    %244 = memref.load %arg2[%c8_110] : memref<36xf32, #tpu.memory_space<smem>>
    %245 = vector.broadcast %244 : f32 to vector<16x16xf32>
    %246 = arith.mulf %243, %245 : vector<16x16xf32>
    %247 = arith.addf %237, %246 : vector<16x16xf32>
    %c9_111 = arith.constant 9 : index
    %248 = memref.load %arg2[%c9_111] : memref<36xf32, #tpu.memory_space<smem>>
    %249 = vector.broadcast %248 : f32 to vector<16x16xf32>
    %250 = arith.mulf %243, %249 : vector<16x16xf32>
    %251 = arith.addf %241, %250 : vector<16x16xf32>
    %c0_112 = arith.constant 0 : index
    %c1_113 = arith.constant 1 : index
    %c0_114 = arith.constant 0 : index
    %252 = vector.load %arg4[%c0_112, %c1_113, %c0_114] : memref<2x18x18xf32, #tpu.memory_space<vmem>>, vector<1x16x16xf32>
    %253 = vector.shape_cast %252 : vector<1x16x16xf32> to vector<16x16xf32>
    %c12_115 = arith.constant 12 : index
    %254 = memref.load %arg2[%c12_115] : memref<36xf32, #tpu.memory_space<smem>>
    %255 = vector.broadcast %254 : f32 to vector<16x16xf32>
    %256 = arith.mulf %253, %255 : vector<16x16xf32>
    %257 = arith.addf %247, %256 : vector<16x16xf32>
    %c13_116 = arith.constant 13 : index
    %258 = memref.load %arg2[%c13_116] : memref<36xf32, #tpu.memory_space<smem>>
    %259 = vector.broadcast %258 : f32 to vector<16x16xf32>
    %260 = arith.mulf %253, %259 : vector<16x16xf32>
    %261 = arith.addf %251, %260 : vector<16x16xf32>
    %c0_117 = arith.constant 0 : index
    %c1_118 = arith.constant 1 : index
    %c1_119 = arith.constant 1 : index
    %262 = vector.load %arg4[%c0_117, %c1_118, %c1_119] : memref<2x18x18xf32, #tpu.memory_space<vmem>>, vector<1x16x16xf32>
    %263 = vector.shape_cast %262 : vector<1x16x16xf32> to vector<16x16xf32>
    %c16_120 = arith.constant 16 : index
    %264 = memref.load %arg2[%c16_120] : memref<36xf32, #tpu.memory_space<smem>>
    %265 = vector.broadcast %264 : f32 to vector<16x16xf32>
    %266 = arith.mulf %263, %265 : vector<16x16xf32>
    %267 = arith.addf %257, %266 : vector<16x16xf32>
    %c17_121 = arith.constant 17 : index
    %268 = memref.load %arg2[%c17_121] : memref<36xf32, #tpu.memory_space<smem>>
    %269 = vector.broadcast %268 : f32 to vector<16x16xf32>
    %270 = arith.mulf %263, %269 : vector<16x16xf32>
    %271 = arith.addf %261, %270 : vector<16x16xf32>
    %c0_122 = arith.constant 0 : index
    %c1_123 = arith.constant 1 : index
    %c2_124 = arith.constant 2 : index
    %272 = vector.load %arg4[%c0_122, %c1_123, %c2_124] : memref<2x18x18xf32, #tpu.memory_space<vmem>>, vector<1x16x16xf32>
    %273 = vector.shape_cast %272 : vector<1x16x16xf32> to vector<16x16xf32>
    %c20_125 = arith.constant 20 : index
    %274 = memref.load %arg2[%c20_125] : memref<36xf32, #tpu.memory_space<smem>>
    %275 = vector.broadcast %274 : f32 to vector<16x16xf32>
    %276 = arith.mulf %273, %275 : vector<16x16xf32>
    %277 = arith.addf %267, %276 : vector<16x16xf32>
    %c21_126 = arith.constant 21 : index
    %278 = memref.load %arg2[%c21_126] : memref<36xf32, #tpu.memory_space<smem>>
    %279 = vector.broadcast %278 : f32 to vector<16x16xf32>
    %280 = arith.mulf %273, %279 : vector<16x16xf32>
    %281 = arith.addf %271, %280 : vector<16x16xf32>
    %c0_127 = arith.constant 0 : index
    %c2_128 = arith.constant 2 : index
    %c0_129 = arith.constant 0 : index
    %282 = vector.load %arg4[%c0_127, %c2_128, %c0_129] : memref<2x18x18xf32, #tpu.memory_space<vmem>>, vector<1x16x16xf32>
    %283 = vector.shape_cast %282 : vector<1x16x16xf32> to vector<16x16xf32>
    %c24_130 = arith.constant 24 : index
    %284 = memref.load %arg2[%c24_130] : memref<36xf32, #tpu.memory_space<smem>>
    %285 = vector.broadcast %284 : f32 to vector<16x16xf32>
    %286 = arith.mulf %283, %285 : vector<16x16xf32>
    %287 = arith.addf %277, %286 : vector<16x16xf32>
    %c25_131 = arith.constant 25 : index
    %288 = memref.load %arg2[%c25_131] : memref<36xf32, #tpu.memory_space<smem>>
    %289 = vector.broadcast %288 : f32 to vector<16x16xf32>
    %290 = arith.mulf %283, %289 : vector<16x16xf32>
    %291 = arith.addf %281, %290 : vector<16x16xf32>
    %c0_132 = arith.constant 0 : index
    %c2_133 = arith.constant 2 : index
    %c1_134 = arith.constant 1 : index
    %292 = vector.load %arg4[%c0_132, %c2_133, %c1_134] : memref<2x18x18xf32, #tpu.memory_space<vmem>>, vector<1x16x16xf32>
    %293 = vector.shape_cast %292 : vector<1x16x16xf32> to vector<16x16xf32>
    %c28_135 = arith.constant 28 : index
    %294 = memref.load %arg2[%c28_135] : memref<36xf32, #tpu.memory_space<smem>>
    %295 = vector.broadcast %294 : f32 to vector<16x16xf32>
    %296 = arith.mulf %293, %295 : vector<16x16xf32>
    %297 = arith.addf %287, %296 : vector<16x16xf32>
    %c29_136 = arith.constant 29 : index
    %298 = memref.load %arg2[%c29_136] : memref<36xf32, #tpu.memory_space<smem>>
    %299 = vector.broadcast %298 : f32 to vector<16x16xf32>
    %300 = arith.mulf %293, %299 : vector<16x16xf32>
    %301 = arith.addf %291, %300 : vector<16x16xf32>
    %c0_137 = arith.constant 0 : index
    %c2_138 = arith.constant 2 : index
    %c2_139 = arith.constant 2 : index
    %302 = vector.load %arg4[%c0_137, %c2_138, %c2_139] : memref<2x18x18xf32, #tpu.memory_space<vmem>>, vector<1x16x16xf32>
    %303 = vector.shape_cast %302 : vector<1x16x16xf32> to vector<16x16xf32>
    %c32_140 = arith.constant 32 : index
    %304 = memref.load %arg2[%c32_140] : memref<36xf32, #tpu.memory_space<smem>>
    %305 = vector.broadcast %304 : f32 to vector<16x16xf32>
    %306 = arith.mulf %303, %305 : vector<16x16xf32>
    %307 = arith.addf %297, %306 : vector<16x16xf32>
    %c33_141 = arith.constant 33 : index
    %308 = memref.load %arg2[%c33_141] : memref<36xf32, #tpu.memory_space<smem>>
    %309 = vector.broadcast %308 : f32 to vector<16x16xf32>
    %310 = arith.mulf %303, %309 : vector<16x16xf32>
    %311 = arith.addf %301, %310 : vector<16x16xf32>
    %c1_142 = arith.constant 1 : index
    %c0_143 = arith.constant 0 : index
    %c0_144 = arith.constant 0 : index
    %312 = vector.load %arg4[%c1_142, %c0_143, %c0_144] : memref<2x18x18xf32, #tpu.memory_space<vmem>>, vector<1x16x16xf32>
    %313 = vector.shape_cast %312 : vector<1x16x16xf32> to vector<16x16xf32>
    %c2_145 = arith.constant 2 : index
    %314 = memref.load %arg2[%c2_145] : memref<36xf32, #tpu.memory_space<smem>>
    %315 = vector.broadcast %314 : f32 to vector<16x16xf32>
    %316 = arith.mulf %313, %315 : vector<16x16xf32>
    %317 = arith.addf %307, %316 : vector<16x16xf32>
    %c3_146 = arith.constant 3 : index
    %318 = memref.load %arg2[%c3_146] : memref<36xf32, #tpu.memory_space<smem>>
    %319 = vector.broadcast %318 : f32 to vector<16x16xf32>
    %320 = arith.mulf %313, %319 : vector<16x16xf32>
    %321 = arith.addf %311, %320 : vector<16x16xf32>
    %c1_147 = arith.constant 1 : index
    %c0_148 = arith.constant 0 : index
    %c1_149 = arith.constant 1 : index
    %322 = vector.load %arg4[%c1_147, %c0_148, %c1_149] : memref<2x18x18xf32, #tpu.memory_space<vmem>>, vector<1x16x16xf32>
    %323 = vector.shape_cast %322 : vector<1x16x16xf32> to vector<16x16xf32>
    %c6_150 = arith.constant 6 : index
    %324 = memref.load %arg2[%c6_150] : memref<36xf32, #tpu.memory_space<smem>>
    %325 = vector.broadcast %324 : f32 to vector<16x16xf32>
    %326 = arith.mulf %323, %325 : vector<16x16xf32>
    %327 = arith.addf %317, %326 : vector<16x16xf32>
    %c7_151 = arith.constant 7 : index
    %328 = memref.load %arg2[%c7_151] : memref<36xf32, #tpu.memory_space<smem>>
    %329 = vector.broadcast %328 : f32 to vector<16x16xf32>
    %330 = arith.mulf %323, %329 : vector<16x16xf32>
    %331 = arith.addf %321, %330 : vector<16x16xf32>
    %c1_152 = arith.constant 1 : index
    %c0_153 = arith.constant 0 : index
    %c2_154 = arith.constant 2 : index
    %332 = vector.load %arg4[%c1_152, %c0_153, %c2_154] : memref<2x18x18xf32, #tpu.memory_space<vmem>>, vector<1x16x16xf32>
    %333 = vector.shape_cast %332 : vector<1x16x16xf32> to vector<16x16xf32>
    %c10_155 = arith.constant 10 : index
    %334 = memref.load %arg2[%c10_155] : memref<36xf32, #tpu.memory_space<smem>>
    %335 = vector.broadcast %334 : f32 to vector<16x16xf32>
    %336 = arith.mulf %333, %335 : vector<16x16xf32>
    %337 = arith.addf %327, %336 : vector<16x16xf32>
    %c11_156 = arith.constant 11 : index
    %338 = memref.load %arg2[%c11_156] : memref<36xf32, #tpu.memory_space<smem>>
    %339 = vector.broadcast %338 : f32 to vector<16x16xf32>
    %340 = arith.mulf %333, %339 : vector<16x16xf32>
    %341 = arith.addf %331, %340 : vector<16x16xf32>
    %c1_157 = arith.constant 1 : index
    %c1_158 = arith.constant 1 : index
    %c0_159 = arith.constant 0 : index
    %342 = vector.load %arg4[%c1_157, %c1_158, %c0_159] : memref<2x18x18xf32, #tpu.memory_space<vmem>>, vector<1x16x16xf32>
    %343 = vector.shape_cast %342 : vector<1x16x16xf32> to vector<16x16xf32>
    %c14_160 = arith.constant 14 : index
    %344 = memref.load %arg2[%c14_160] : memref<36xf32, #tpu.memory_space<smem>>
    %345 = vector.broadcast %344 : f32 to vector<16x16xf32>
    %346 = arith.mulf %343, %345 : vector<16x16xf32>
    %347 = arith.addf %337, %346 : vector<16x16xf32>
    %c15_161 = arith.constant 15 : index
    %348 = memref.load %arg2[%c15_161] : memref<36xf32, #tpu.memory_space<smem>>
    %349 = vector.broadcast %348 : f32 to vector<16x16xf32>
    %350 = arith.mulf %343, %349 : vector<16x16xf32>
    %351 = arith.addf %341, %350 : vector<16x16xf32>
    %c1_162 = arith.constant 1 : index
    %c1_163 = arith.constant 1 : index
    %c1_164 = arith.constant 1 : index
    %352 = vector.load %arg4[%c1_162, %c1_163, %c1_164] : memref<2x18x18xf32, #tpu.memory_space<vmem>>, vector<1x16x16xf32>
    %353 = vector.shape_cast %352 : vector<1x16x16xf32> to vector<16x16xf32>
    %c18_165 = arith.constant 18 : index
    %354 = memref.load %arg2[%c18_165] : memref<36xf32, #tpu.memory_space<smem>>
    %355 = vector.broadcast %354 : f32 to vector<16x16xf32>
    %356 = arith.mulf %353, %355 : vector<16x16xf32>
    %357 = arith.addf %347, %356 : vector<16x16xf32>
    %c19_166 = arith.constant 19 : index
    %358 = memref.load %arg2[%c19_166] : memref<36xf32, #tpu.memory_space<smem>>
    %359 = vector.broadcast %358 : f32 to vector<16x16xf32>
    %360 = arith.mulf %353, %359 : vector<16x16xf32>
    %361 = arith.addf %351, %360 : vector<16x16xf32>
    %c1_167 = arith.constant 1 : index
    %c1_168 = arith.constant 1 : index
    %c2_169 = arith.constant 2 : index
    %362 = vector.load %arg4[%c1_167, %c1_168, %c2_169] : memref<2x18x18xf32, #tpu.memory_space<vmem>>, vector<1x16x16xf32>
    %363 = vector.shape_cast %362 : vector<1x16x16xf32> to vector<16x16xf32>
    %c22_170 = arith.constant 22 : index
    %364 = memref.load %arg2[%c22_170] : memref<36xf32, #tpu.memory_space<smem>>
    %365 = vector.broadcast %364 : f32 to vector<16x16xf32>
    %366 = arith.mulf %363, %365 : vector<16x16xf32>
    %367 = arith.addf %357, %366 : vector<16x16xf32>
    %c23_171 = arith.constant 23 : index
    %368 = memref.load %arg2[%c23_171] : memref<36xf32, #tpu.memory_space<smem>>
    %369 = vector.broadcast %368 : f32 to vector<16x16xf32>
    %370 = arith.mulf %363, %369 : vector<16x16xf32>
    %371 = arith.addf %361, %370 : vector<16x16xf32>
    %c1_172 = arith.constant 1 : index
    %c2_173 = arith.constant 2 : index
    %c0_174 = arith.constant 0 : index
    %372 = vector.load %arg4[%c1_172, %c2_173, %c0_174] : memref<2x18x18xf32, #tpu.memory_space<vmem>>, vector<1x16x16xf32>
    %373 = vector.shape_cast %372 : vector<1x16x16xf32> to vector<16x16xf32>
    %c26_175 = arith.constant 26 : index
    %374 = memref.load %arg2[%c26_175] : memref<36xf32, #tpu.memory_space<smem>>
    %375 = vector.broadcast %374 : f32 to vector<16x16xf32>
    %376 = arith.mulf %373, %375 : vector<16x16xf32>
    %377 = arith.addf %367, %376 : vector<16x16xf32>
    %c27_176 = arith.constant 27 : index
    %378 = memref.load %arg2[%c27_176] : memref<36xf32, #tpu.memory_space<smem>>
    %379 = vector.broadcast %378 : f32 to vector<16x16xf32>
    %380 = arith.mulf %373, %379 : vector<16x16xf32>
    %381 = arith.addf %371, %380 : vector<16x16xf32>
    %c1_177 = arith.constant 1 : index
    %c2_178 = arith.constant 2 : index
    %c1_179 = arith.constant 1 : index
    %382 = vector.load %arg4[%c1_177, %c2_178, %c1_179] : memref<2x18x18xf32, #tpu.memory_space<vmem>>, vector<1x16x16xf32>
    %383 = vector.shape_cast %382 : vector<1x16x16xf32> to vector<16x16xf32>
    %c30_180 = arith.constant 30 : index
    %384 = memref.load %arg2[%c30_180] : memref<36xf32, #tpu.memory_space<smem>>
    %385 = vector.broadcast %384 : f32 to vector<16x16xf32>
    %386 = arith.mulf %383, %385 : vector<16x16xf32>
    %387 = arith.addf %377, %386 : vector<16x16xf32>
    %c31_181 = arith.constant 31 : index
    %388 = memref.load %arg2[%c31_181] : memref<36xf32, #tpu.memory_space<smem>>
    %389 = vector.broadcast %388 : f32 to vector<16x16xf32>
    %390 = arith.mulf %383, %389 : vector<16x16xf32>
    %391 = arith.addf %381, %390 : vector<16x16xf32>
    %c1_182 = arith.constant 1 : index
    %c2_183 = arith.constant 2 : index
    %c2_184 = arith.constant 2 : index
    %392 = vector.load %arg4[%c1_182, %c2_183, %c2_184] : memref<2x18x18xf32, #tpu.memory_space<vmem>>, vector<1x16x16xf32>
    %393 = vector.shape_cast %392 : vector<1x16x16xf32> to vector<16x16xf32>
    %c34_185 = arith.constant 34 : index
    %394 = memref.load %arg2[%c34_185] : memref<36xf32, #tpu.memory_space<smem>>
    %395 = vector.broadcast %394 : f32 to vector<16x16xf32>
    %396 = arith.mulf %393, %395 : vector<16x16xf32>
    %397 = arith.addf %387, %396 : vector<16x16xf32>
    %c35_186 = arith.constant 35 : index
    %398 = memref.load %arg2[%c35_186] : memref<36xf32, #tpu.memory_space<smem>>
    %399 = vector.broadcast %398 : f32 to vector<16x16xf32>
    %400 = arith.mulf %393, %399 : vector<16x16xf32>
    %401 = arith.addf %391, %400 : vector<16x16xf32>
    %cst_187 = arith.constant dense<0.000000e+00> : vector<16xf32>
    %402 = vector.multi_reduction <add>, %397, %cst_187 [1] : vector<16x16xf32> to vector<16xf32>
    %403 = vector.shape_cast %402 : vector<16xf32> to vector<16x1xf32>
    %cst_188 = arith.constant dense<0.000000e+00> : vector<1xf32>
    %404 = vector.multi_reduction <add>, %403, %cst_188 [0] : vector<16x1xf32> to vector<1xf32>
    %405 = vector.shape_cast %404 : vector<1xf32> to vector<1x1xf32>
    %406 = arith.addf %199, %405 : vector<1x1xf32>
    %407 = arith.mulf %397, %397 : vector<16x16xf32>
    %cst_189 = arith.constant dense<0.000000e+00> : vector<16xf32>
    %408 = vector.multi_reduction <add>, %407, %cst_189 [1] : vector<16x16xf32> to vector<16xf32>
    %409 = vector.shape_cast %408 : vector<16xf32> to vector<16x1xf32>
    %cst_190 = arith.constant dense<0.000000e+00> : vector<1xf32>
    %410 = vector.multi_reduction <add>, %409, %cst_190 [0] : vector<16x1xf32> to vector<1xf32>
    %411 = vector.shape_cast %410 : vector<1xf32> to vector<1x1xf32>
    %412 = arith.addf %205, %411 : vector<1x1xf32>
    %cst_191 = arith.constant dense<0.000000e+00> : vector<16xf32>
    %413 = vector.multi_reduction <add>, %401, %cst_191 [1] : vector<16x16xf32> to vector<16xf32>
    %414 = vector.shape_cast %413 : vector<16xf32> to vector<16x1xf32>
    %cst_192 = arith.constant dense<0.000000e+00> : vector<1xf32>
    %415 = vector.multi_reduction <add>, %414, %cst_192 [0] : vector<16x1xf32> to vector<1xf32>
    %416 = vector.shape_cast %415 : vector<1xf32> to vector<1x1xf32>
    %417 = arith.addf %210, %416 : vector<1x1xf32>
    %418 = arith.mulf %401, %401 : vector<16x16xf32>
    %cst_193 = arith.constant dense<0.000000e+00> : vector<16xf32>
    %419 = vector.multi_reduction <add>, %418, %cst_193 [1] : vector<16x16xf32> to vector<16xf32>
    %420 = vector.shape_cast %419 : vector<16xf32> to vector<16x1xf32>
    %cst_194 = arith.constant dense<0.000000e+00> : vector<1xf32>
    %421 = vector.multi_reduction <add>, %420, %cst_194 [0] : vector<16x1xf32> to vector<1xf32>
    %422 = vector.shape_cast %421 : vector<1xf32> to vector<1x1xf32>
    %423 = arith.addf %216, %422 : vector<1x1xf32>
    %c0_195 = arith.constant 0 : index
    %c0_196 = arith.constant 0 : index
    %c0_197 = arith.constant 0 : index
    %424 = vector.load %arg3[%c0_195, %c0_196, %c0_197] : memref<1x2x2xf32, #tpu.memory_space<vmem>>, vector<1x1x1xf32>
    %425 = vector.shape_cast %424 : vector<1x1x1xf32> to vector<1x1xf32>
    %426 = vector.shape_cast %406 : vector<1x1xf32> to vector<1x1x1xf32>
    tpu.vector_store %arg3[%c0_195, %c0_196, %c0_197], %426 {strides = array<i32>} : memref<1x2x2xf32, #tpu.memory_space<vmem>>, vector<1x1x1xf32>,
    %c0_198 = arith.constant 0 : index
    %c1_199 = arith.constant 1 : index
    %c0_200 = arith.constant 0 : index
    %427 = vector.load %arg3[%c0_198, %c1_199, %c0_200] : memref<1x2x2xf32, #tpu.memory_space<vmem>>, vector<1x1x1xf32>
    %428 = vector.shape_cast %427 : vector<1x1x1xf32> to vector<1x1xf32>
    %429 = vector.shape_cast %412 : vector<1x1xf32> to vector<1x1x1xf32>
    tpu.vector_store %arg3[%c0_198, %c1_199, %c0_200], %429 {strides = array<i32>} : memref<1x2x2xf32, #tpu.memory_space<vmem>>, vector<1x1x1xf32>,
    %c0_201 = arith.constant 0 : index
    %c0_202 = arith.constant 0 : index
    %c1_203 = arith.constant 1 : index
    %430 = vector.load %arg3[%c0_201, %c0_202, %c1_203] : memref<1x2x2xf32, #tpu.memory_space<vmem>>, vector<1x1x1xf32>
    %431 = vector.shape_cast %430 : vector<1x1x1xf32> to vector<1x1xf32>
    %432 = vector.shape_cast %417 : vector<1x1xf32> to vector<1x1x1xf32>
    tpu.vector_store %arg3[%c0_201, %c0_202, %c1_203], %432 {strides = array<i32>} : memref<1x2x2xf32, #tpu.memory_space<vmem>>, vector<1x1x1xf32>,
    %c0_204 = arith.constant 0 : index
    %c1_205 = arith.constant 1 : index
    %c1_206 = arith.constant 1 : index
    %433 = vector.load %arg3[%c0_204, %c1_205, %c1_206] : memref<1x2x2xf32, #tpu.memory_space<vmem>>, vector<1x1x1xf32>
    %434 = vector.shape_cast %433 : vector<1x1x1xf32> to vector<1x1xf32>
    %435 = vector.shape_cast %423 : vector<1x1xf32> to vector<1x1x1xf32>
    tpu.vector_store %arg3[%c0_204, %c1_205, %c1_206], %435 {strides = array<i32>} : memref<1x2x2xf32, #tpu.memory_space<vmem>>, vector<1x1x1xf32>,
    return
  }
  func.func @transform_0(%arg0: i32) -> (i32, i32, i32, i32) {
    %c0_i32 = arith.constant 0 : i32
    %c0_i32_0 = arith.constant 0 : i32
    %c0_i32_1 = arith.constant 0 : i32
    %c0_i32_2 = arith.constant 0 : i32
    return %arg0, %c0_i32, %c0_i32_0, %c0_i32_1 : i32, i32, i32, i32
  }
  func.func @transform_1(%arg0: i32) -> i32 {
    %c0_i32 = arith.constant 0 : i32
    %c0_i32_0 = arith.constant 0 : i32
    return %c0_i32 : i32
  }
  func.func @transform_2(%arg0: i32) -> (i32, i32, i32) {
    %c0_i32 = arith.constant 0 : i32
    %c0_i32_0 = arith.constant 0 : i32
    %c0_i32_1 = arith.constant 0 : i32
    return %arg0, %c0_i32, %c0_i32_0 : i32, i32, i32
  }
}

</mosaic_0001>

<llo_original>
// kernel: tpu_custom_call.1
$region0: #{tpu_custom_call.1}
  #allocation0 [shape = 'u32[]', space=smem, size = 0x4, offset = 0x4, fixed_abs, tag = 'smem constant byte address 0x4 - core index']
  #allocation1 [shape = 'u32[72,128]{1,0:T(1,128)}', space=vmem, size = 0x9000, scoped, tag = 'internal scratch']
  #allocation2 [shape = 'f32[2,18,18]{2,1,0:T(8,128)}', space=vmem, size = 0x6000, scoped, tag = 'scratch operand']
  %s0 = inlined_call_operand.hbm [shape: f32[2,2,16,16], index: 0, kind: input, shape index: {}]
  %s1 = inlined_call_operand.hbm [shape: f32[36], index: 1, kind: input, shape index: {}]
  %s2 = inlined_call_operand.hbm [shape: f32[1,2,2], index: 2, kind: output, shape index: {}]
  %s3 = sld [smem:[#allocation0]]
  $region26: #{tpu_custom_call.1} parent=0
    _
  %s5 = ssub.s32 1, %s3
  %s6 = scalar_select 0, %s5, %s3
  $region1: #{tpu_custom_call.1} parent=0
    #allocation3 [shape = 'u8[32768]{0}', space=vmem, size = 0x8000, scoped, tag = 'input window, operand 0, single buffered']
    #allocation4 [shape = 's32[1]{0}', space=sflag, size = 0x4, scoped, tag = 'scoped memory for tpu_custom_call.1']
    #allocation5 [shape = 's32[1]{0}', space=sflag, size = 0x4, scoped, tag = 'scoped memory for tpu_custom_call.1']
    #allocation6 [shape = 's32[1]{0}', space=sflag, size = 0x4, scoped, tag = 'scoped memory for tpu_custom_call.1']
    #allocation7 [shape = 'u8[512]{0}', space=smem, size = 0x200, scoped, tag = 'input window, operand 1, single buffered']
    #allocation8 [shape = 'u8[1024]{0}', space=vmem, size = 0x400, scoped, tag = 'output window, operand 0, single buffered']
    %7 = vsyncpa [#allocation4], 0
    %8 = vsyncpa [#allocation6], 0
    %9 = vsyncpa [#allocation5], 0
    // Predicated region
    $region2: #{tpu_custom_call.1} parent=1 // pred_check
      _
    $region3: #{tpu_custom_call.1} parent=1 // pred_check_branch
      %11 = sbr.rel (0) target = $region5
    $region4: #{tpu_custom_call.1} parent=1 // pred_region
      %13 = vsyncadd [#allocation4], 0
      %s14 = sshll.u32 %s0, 4
      %s15 = int_to_ptr.hbm [resolvable:$true] %s14
      %s16 = sshll.u32 [#allocation3], 4
      %s17 = int_to_ptr.vmem [resolvable:$true] %s16
      %22 = dma.hbm_to_vmem [thread:$0]  %s15, 1024, %s17, [#allocation4], 128, 128, 8
    $region5: #{tpu_custom_call.1} parent=1 // pred_fallthru
      _
    // Predicated region
    $region6: #{tpu_custom_call.1} parent=1 // pred_check
      _
    $region7: #{tpu_custom_call.1} parent=1 // pred_check_branch
      %24 = sbr.rel (0) target = $region9
    $region8: #{tpu_custom_call.1} parent=1 // pred_region
      %26 = vsyncadd [#allocation6], 0
      %s28 = sshll.u32 %s1, 4
      %s29 = int_to_ptr.hbm [resolvable:$true] %s28
      %31 = dma.hbm_to_smem %s29, 16, [#allocation7], [#allocation6]
    $region9: #{tpu_custom_call.1} parent=1 // pred_fallthru
      _
    // Predicated region
    $region10: #{tpu_custom_call.1} parent=1 // pred_check
      _
    $region11: #{tpu_custom_call.1} parent=1 // pred_check_branch
      %33 = sbr.rel (0) target = $region13
    $region12: #{tpu_custom_call.1} parent=1 // pred_region
      %35 = dma.done [#allocation4], 1024
    $region13: #{tpu_custom_call.1} parent=1 // pred_fallthru
      _
    // Predicated region
    $region14: #{tpu_custom_call.1} parent=1 // pred_check
      _
    $region15: #{tpu_custom_call.1} parent=1 // pred_check_branch
      %37 = sbr.rel (0) target = $region17
    $region16: #{tpu_custom_call.1} parent=1 // pred_region
      %39 = dma.done [#allocation6], 16
    $region17: #{tpu_custom_call.1} parent=1 // pred_fallthru
      _
    %40 = sfence
    %vm41 = vcmask 139264
    %42 = vst.msk [vmem:[#allocation2] sm:$0x1] %vm41, 0.0
    %43 = vst.msk [vmem:[#allocation2 + $0x18] sm:$0x1] %vm41, 0.0
    %44 = vst.msk [vmem:[#allocation2 + $0x11] sm:$0x1] %vm41, 0.0
    %45 = vst.msk [vmem:[#allocation2 + $0x29] sm:$0x1] %vm41, 0.0
    %vm46 = vcmask 7168
    %47 = vst.msk [vmem:[#allocation2 + $0x1] sm:$0xff] %vm46, 0.0
    %48 = vst.msk [vmem:[#allocation2 + $0x9] sm:$0xff] %vm46, 0.0
    %49 = vst.msk [vmem:[#allocation2 + $0x19] sm:$0xff] %vm46, 0.0
    %50 = vst.msk [vmem:[#allocation2 + $0x21] sm:$0xff] %vm46, 0.0
    %vm51 = vcmask 146568
    %52 = vst.msk [vmem:[#allocation2 + $0x1] sm:$0xff] %vm51, 0.0
    %53 = vst.msk [vmem:[#allocation2 + $0x9] sm:$0xff] %vm51, 0.0
    %54 = vst.msk [vmem:[#allocation2 + $0x19] sm:$0xff] %vm51, 0.0
    %55 = vst.msk [vmem:[#allocation2 + $0x21] sm:$0xff] %vm51, 0.0
    %v56 = vld [vmem:[#allocation3] sm:$0xff]
    %v57 = vld [vmem:[#allocation3 + $0x8] sm:$0xff]
    %v58 = vld [vmem:[#allocation3 + $0x10] sm:$0xff]
    %v59 = vld [vmem:[#allocation3 + $0x18] sm:$0xff]
    %64 = vrot.lane.b32.xlu0 %v56, 1
    %v65 = vpop.permute.xlu0 %64
    %66 = vrot.lane.b32.xlu0 %v57, 1
    %v67 = vpop.permute.xlu0 %66
    %68 = vrot.lane.b32.xlu0 %v58, 1
    %v69 = vpop.permute.xlu0 %68
    %70 = vrot.lane.b32.xlu0 %v59, 1
    %v71 = vpop.permute.xlu0 %70
    %vm76 = vcmask 138248
    %77 = vst.msk [vmem:[#allocation2 + $0x1] sm:$0xff] %vm76, %v65
    %78 = vst.msk [vmem:[#allocation2 + $0x9] sm:$0xff] %vm76, %v67
    %79 = vst.msk [vmem:[#allocation2 + $0x19] sm:$0xff] %vm76, %v69
    %80 = vst.msk [vmem:[#allocation2 + $0x21] sm:$0xff] %vm76, %v71
    %v81 = vld [vmem:[#allocation2] sm:$0xff]
    %v82 = vld [vmem:[#allocation2 + $0x8] sm:$0xff]
    %s83 = sld [smem:[#allocation7]]
    %v84 = vstv %s83
    %v85 = vmul.f32 %v81, %v84
    %v86 = vmul.f32 %v82, %v84
    %v87 = vadd.f32 %v85, 0.0
    %v88 = vadd.f32 %v86, 0.0
    %s89 = sld [smem:[#allocation7 + $0x1]]
    %v90 = vstv %s89
    %v91 = vmul.f32 %v81, %v90
    %v92 = vmul.f32 %v82, %v90
    %v93 = vadd.f32 %v91, 0.0
    %v94 = vadd.f32 %v92, 0.0
    %s95 = sld [smem:[#allocation7 + $0x4]]
    %v96 = vstv %s95
    %v97 = vmul.f32 %v81, %v96
    %v98 = vmul.f32 %v82, %v96
    %101 = vrot.lane.b32.xlu0 %v97, 127
    %v102 = vpop.permute.xlu0 %101
    %103 = vrot.lane.b32.xlu0 %v98, 127
    %v104 = vpop.permute.xlu0 %103
    %v107 = vadd.f32 %v87, %v102
    %v108 = vadd.f32 %v88, %v104
    %s109 = sld [smem:[#allocation7 + $0x5]]
    %v110 = vstv %s109
    %v111 = vmul.f32 %v81, %v110
    %v112 = vmul.f32 %v82, %v110
    %115 = vrot.lane.b32.xlu0 %v111, 127
    %v116 = vpop.permute.xlu0 %115
    %117 = vrot.lane.b32.xlu0 %v112, 127
    %v118 = vpop.permute.xlu0 %117
    %v121 = vadd.f32 %v93, %v116
    %v122 = vadd.f32 %v94, %v118
    %s123 = sld [smem:[#allocation7 + $0x8]]
    %v124 = vstv %s123
    %v125 = vmul.f32 %v81, %v124
    %v126 = vmul.f32 %v82, %v124
    %129 = vrot.lane.b32.xlu0 %v125, 126
    %v130 = vpop.permute.xlu0 %129
    %131 = vrot.lane.b32.xlu0 %v126, 126
    %v132 = vpop.permute.xlu0 %131
    %v135 = vadd.f32 %v107, %v130
    %v136 = vadd.f32 %v108, %v132
    %s137 = sld [smem:[#allocation7 + $0x9]]
    %v138 = vstv %s137
    %v139 = vmul.f32 %v81, %v138
    %v140 = vmul.f32 %v82, %v138
    %143 = vrot.lane.b32.xlu0 %v139, 126
    %v144 = vpop.permute.xlu0 %143
    %145 = vrot.lane.b32.xlu0 %v140, 126
    %v146 = vpop.permute.xlu0 %145
    %v149 = vadd.f32 %v121, %v144
    %v150 = vadd.f32 %v122, %v146
    %v151 = vld [vmem:[#allocation2 + $0x1] sm:$0xff]
    %v152 = vld [vmem:[#allocation2 + $0x9] sm:$0xff]
    %s153 = sld [smem:[#allocation7 + $0xc]]
    %v154 = vstv %s153
    %v155 = vmul.f32 %v151, %v154
    %v156 = vmul.f32 %v152, %v154
    %v157 = vadd.f32 %v135, %v155
    %v158 = vadd.f32 %v136, %v156
    %s159 = sld [smem:[#allocation7 + $0xd]]
    %v160 = vstv %s159
    %v161 = vmul.f32 %v151, %v160
    %v162 = vmul.f32 %v152, %v160
    %v163 = vadd.f32 %v149, %v161
    %v164 = vadd.f32 %v150, %v162
    %s165 = sld [smem:[#allocation7 + $0x10]]
    %v166 = vstv %s165
    %v167 = vmul.f32 %v151, %v166
    %v168 = vmul.f32 %v152, %v166
    %171 = vrot.lane.b32.xlu0 %v167, 127
    %v172 = vpop.permute.xlu0 %171
    %173 = vrot.lane.b32.xlu0 %v168, 127
    %v174 = vpop.permute.xlu0 %173
    %v177 = vadd.f32 %v157, %v172
    %v178 = vadd.f32 %v158, %v174
    %s179 = sld [smem:[#allocation7 + $0x11]]
    %v180 = vstv %s179
    %v181 = vmul.f32 %v151, %v180
    %v182 = vmul.f32 %v152, %v180
    %185 = vrot.lane.b32.xlu0 %v181, 127
    %v186 = vpop.permute.xlu0 %185
    %187 = vrot.lane.b32.xlu0 %v182, 127
    %v188 = vpop.permute.xlu0 %187
    %v191 = vadd.f32 %v163, %v186
    %v192 = vadd.f32 %v164, %v188
    %s193 = sld [smem:[#allocation7 + $0x14]]
    %v194 = vstv %s193
    %v195 = vmul.f32 %v151, %v194
    %v196 = vmul.f32 %v152, %v194
    %199 = vrot.lane.b32.xlu0 %v195, 126
    %v200 = vpop.permute.xlu0 %199
    %201 = vrot.lane.b32.xlu0 %v196, 126
    %v202 = vpop.permute.xlu0 %201
    %v205 = vadd.f32 %v177, %v200
    %v206 = vadd.f32 %v178, %v202
    %s207 = sld [smem:[#allocation7 + $0x15]]
    %v208 = vstv %s207
    %v209 = vmul.f32 %v151, %v208
    %v210 = vmul.f32 %v152, %v208
    %213 = vrot.lane.b32.xlu0 %v209, 126
    %v214 = vpop.permute.xlu0 %213
    %215 = vrot.lane.b32.xlu0 %v210, 126
    %v216 = vpop.permute.xlu0 %215
    %v219 = vadd.f32 %v191, %v214
    %v220 = vadd.f32 %v192, %v216
    %v221 = vld [vmem:[#allocation2 + $0x2] sm:$0xff]
    %v222 = vld [vmem:[#allocation2 + $0xa] sm:$0xff]
    %s223 = sld [smem:[#allocation7 + $0x18]]
    %v224 = vstv %s223
    %v225 = vmul.f32 %v221, %v224
    %v226 = vmul.f32 %v222, %v224
    %v227 = vadd.f32 %v205, %v225
    %v228 = vadd.f32 %v206, %v226
    %s229 = sld [smem:[#allocation7 + $0x19]]
    %v230 = vstv %s229
    %v231 = vmul.f32 %v221, %v230
    %v232 = vmul.f32 %v222, %v230
    %v233 = vadd.f32 %v219, %v231
    %v234 = vadd.f32 %v220, %v232
    %s235 = sld [smem:[#allocation7 + $0x1c]]
    %v236 = vstv %s235
    %v237 = vmul.f32 %v221, %v236
    %v238 = vmul.f32 %v222, %v236
    %241 = vrot.lane.b32.xlu0 %v237, 127
    %v242 = vpop.permute.xlu0 %241
    %243 = vrot.lane.b32.xlu0 %v238, 127
    %v244 = vpop.permute.xlu0 %243
    %v247 = vadd.f32 %v227, %v242
    %v248 = vadd.f32 %v228, %v244
    %s249 = sld [smem:[#allocation7 + $0x1d]]
    %v250 = vstv %s249
    %v251 = vmul.f32 %v221, %v250
    %v252 = vmul.f32 %v222, %v250
    %255 = vrot.lane.b32.xlu0 %v251, 127
    %v256 = vpop.permute.xlu0 %255
    %257 = vrot.lane.b32.xlu0 %v252, 127
    %v258 = vpop.permute.xlu0 %257
    %v261 = vadd.f32 %v233, %v256
    %v262 = vadd.f32 %v234, %v258
    %s263 = sld [smem:[#allocation7 + $0x20]]
    %v264 = vstv %s263
    %v265 = vmul.f32 %v221, %v264
    %v266 = vmul.f32 %v222, %v264
    %269 = vrot.lane.b32.xlu0 %v265, 126
    %v270 = vpop.permute.xlu0 %269
    %271 = vrot.lane.b32.xlu0 %v266, 126
    %v272 = vpop.permute.xlu0 %271
    %v275 = vadd.f32 %v247, %v270
    %v276 = vadd.f32 %v248, %v272
    %s277 = sld [smem:[#allocation7 + $0x21]]
    %v278 = vstv %s277
    %v279 = vmul.f32 %v221, %v278
    %v280 = vmul.f32 %v222, %v278
    %283 = vrot.lane.b32.xlu0 %v279, 126
    %v284 = vpop.permute.xlu0 %283
    %285 = vrot.lane.b32.xlu0 %v280, 126
    %v286 = vpop.permute.xlu0 %285
    %v289 = vadd.f32 %v261, %v284
    %v290 = vadd.f32 %v262, %v286
    %s291 = scalar_lea.vmem [#allocation2], 24
    %v292 = vld [vmem:[%s291] sm:$0xff]
    %v293 = vld [vmem:[%s291 + $0x8] sm:$0xff]
    %s294 = sld [smem:[#allocation7 + $0x2]]
    %v295 = vstv %s294
    %v296 = vmul.f32 %v292, %v295
    %v297 = vmul.f32 %v293, %v295
    %v298 = vadd.f32 %v275, %v296
    %v299 = vadd.f32 %v276, %v297
    %s300 = sld [smem:[#allocation7 + $0x3]]
    %v301 = vstv %s300
    %v302 = vmul.f32 %v292, %v301
    %v303 = vmul.f32 %v293, %v301
    %v304 = vadd.f32 %v289, %v302
    %v305 = vadd.f32 %v290, %v303
    %s306 = sld [smem:[#allocation7 + $0x6]]
    %v307 = vstv %s306
    %v308 = vmul.f32 %v292, %v307
    %v309 = vmul.f32 %v293, %v307
    %312 = vrot.lane.b32.xlu0 %v308, 127
    %v313 = vpop.permute.xlu0 %312
    %314 = vrot.lane.b32.xlu0 %v309, 127
    %v315 = vpop.permute.xlu0 %314
    %v318 = vadd.f32 %v298, %v313
    %v319 = vadd.f32 %v299, %v315
    %s320 = sld [smem:[#allocation7 + $0x7]]
    %v321 = vstv %s320
    %v322 = vmul.f32 %v292, %v321
    %v323 = vmul.f32 %v293, %v321
    %326 = vrot.lane.b32.xlu0 %v322, 127
    %v327 = vpop.permute.xlu0 %326
    %328 = vrot.lane.b32.xlu0 %v323, 127
    %v329 = vpop.permute.xlu0 %328
    %v332 = vadd.f32 %v304, %v327
    %v333 = vadd.f32 %v305, %v329
    %s334 = sld [smem:[#allocation7 + $0xa]]
    %v335 = vstv %s334
    %v336 = vmul.f32 %v292, %v335
    %v337 = vmul.f32 %v293, %v335
    %340 = vrot.lane.b32.xlu0 %v336, 126
    %v341 = vpop.permute.xlu0 %340
    %342 = vrot.lane.b32.xlu0 %v337, 126
    %v343 = vpop.permute.xlu0 %342
    %v346 = vadd.f32 %v318, %v341
    %v347 = vadd.f32 %v319, %v343
    %s348 = sld [smem:[#allocation7 + $0xb]]
    %v349 = vstv %s348
    %v350 = vmul.f32 %v292, %v349
    %v351 = vmul.f32 %v293, %v349
    %354 = vrot.lane.b32.xlu0 %v350, 126
    %v355 = vpop.permute.xlu0 %354
    %356 = vrot.lane.b32.xlu0 %v351, 126
    %v357 = vpop.permute.xlu0 %356
    %v360 = vadd.f32 %v332, %v355
    %v361 = vadd.f32 %v333, %v357
    %v362 = vld [vmem:[%s291 + $0x1] sm:$0xff]
    %v363 = vld [vmem:[%s291 + $0x9] sm:$0xff]
    %s364 = sld [smem:[#allocation7 + $0xe]]
    %v365 = vstv %s364
    %v366 = vmul.f32 %v362, %v365
    %v367 = vmul.f32 %v363, %v365
    %v368 = vadd.f32 %v346, %v366
    %v369 = vadd.f32 %v347, %v367
    %s370 = sld [smem:[#allocation7 + $0xf]]
    %v371 = vstv %s370
    %v372 = vmul.f32 %v362, %v371
    %v373 = vmul.f32 %v363, %v371
    %v374 = vadd.f32 %v360, %v372
    %v375 = vadd.f32 %v361, %v373
    %s376 = sld [smem:[#allocation7 + $0x12]]
    %v377 = vstv %s376
    %v378 = vmul.f32 %v362, %v377
    %v379 = vmul.f32 %v363, %v377
    %382 = vrot.lane.b32.xlu0 %v378, 127
    %v383 = vpop.permute.xlu0 %382
    %384 = vrot.lane.b32.xlu0 %v379, 127
    %v385 = vpop.permute.xlu0 %384
    %v388 = vadd.f32 %v368, %v383
    %v389 = vadd.f32 %v369, %v385
    %s390 = sld [smem:[#allocation7 + $0x13]]
    %v391 = vstv %s390
    %v392 = vmul.f32 %v362, %v391
    %v393 = vmul.f32 %v363, %v391
    %396 = vrot.lane.b32.xlu0 %v392, 127
    %v397 = vpop.permute.xlu0 %396
    %398 = vrot.lane.b32.xlu0 %v393, 127
    %v399 = vpop.permute.xlu0 %398
    %v402 = vadd.f32 %v374, %v397
    %v403 = vadd.f32 %v375, %v399
    %s404 = sld [smem:[#allocation7 + $0x16]]
    %v405 = vstv %s404
    %v406 = vmul.f32 %v362, %v405
    %v407 = vmul.f32 %v363, %v405
    %410 = vrot.lane.b32.xlu0 %v406, 126
    %v411 = vpop.permute.xlu0 %410
    %412 = vrot.lane.b32.xlu0 %v407, 126
    %v413 = vpop.permute.xlu0 %412
    %v416 = vadd.f32 %v388, %v411
    %v417 = vadd.f32 %v389, %v413
    %s418 = sld [smem:[#allocation7 + $0x17]]
    %v419 = vstv %s418
    %v420 = vmul.f32 %v362, %v419
    %v421 = vmul.f32 %v363, %v419
    %424 = vrot.lane.b32.xlu0 %v420, 126
    %v425 = vpop.permute.xlu0 %424
    %426 = vrot.lane.b32.xlu0 %v421, 126
    %v427 = vpop.permute.xlu0 %426
    %v430 = vadd.f32 %v402, %v425
    %v431 = vadd.f32 %v403, %v427
    %v432 = vld [vmem:[%s291 + $0x2] sm:$0xff]
    %v433 = vld [vmem:[%s291 + $0xa] sm:$0xff]
    %s434 = sld [smem:[#allocation7 + $0x1a]]
    %v435 = vstv %s434
    %v436 = vmul.f32 %v432, %v435
    %v437 = vmul.f32 %v433, %v435
    %v438 = vadd.f32 %v416, %v436
    %v439 = vadd.f32 %v417, %v437
    %s440 = sld [smem:[#allocation7 + $0x1b]]
    %v441 = vstv %s440
    %v442 = vmul.f32 %v432, %v441
    %v443 = vmul.f32 %v433, %v441
    %v444 = vadd.f32 %v430, %v442
    %v445 = vadd.f32 %v431, %v443
    %s446 = sld [smem:[#allocation7 + $0x1e]]
    %v447 = vstv %s446
    %v448 = vmul.f32 %v432, %v447
    %v449 = vmul.f32 %v433, %v447
    %452 = vrot.lane.b32.xlu0 %v448, 127
    %v453 = vpop.permute.xlu0 %452
    %454 = vrot.lane.b32.xlu0 %v449, 127
    %v455 = vpop.permute.xlu0 %454
    %v458 = vadd.f32 %v438, %v453
    %v459 = vadd.f32 %v439, %v455
    %s460 = sld [smem:[#allocation7 + $0x1f]]
    %v461 = vstv %s460
    %v462 = vmul.f32 %v432, %v461
    %v463 = vmul.f32 %v433, %v461
    %466 = vrot.lane.b32.xlu0 %v462, 127
    %v467 = vpop.permute.xlu0 %466
    %468 = vrot.lane.b32.xlu0 %v463, 127
    %v469 = vpop.permute.xlu0 %468
    %v472 = vadd.f32 %v444, %v467
    %v473 = vadd.f32 %v445, %v469
    %s474 = sld [smem:[#allocation7 + $0x22]]
    %v475 = vstv %s474
    %v476 = vmul.f32 %v432, %v475
    %v477 = vmul.f32 %v433, %v475
    %480 = vrot.lane.b32.xlu0 %v476, 126
    %v481 = vpop.permute.xlu0 %480
    %482 = vrot.lane.b32.xlu0 %v477, 126
    %v483 = vpop.permute.xlu0 %482
    %v486 = vadd.f32 %v458, %v481
    %v487 = vadd.f32 %v459, %v483
    %s488 = sld [smem:[#allocation7 + $0x23]]
    %v489 = vstv %s488
    %v490 = vmul.f32 %v432, %v489
    %v491 = vmul.f32 %v433, %v489
    %494 = vrot.lane.b32.xlu0 %v490, 126
    %v495 = vpop.permute.xlu0 %494
    %496 = vrot.lane.b32.xlu0 %v491, 126
    %v497 = vpop.permute.xlu0 %496
    %v500 = vadd.f32 %v472, %v495
    %v501 = vadd.f32 %v473, %v497
    %vm502 = vcmask 130048
    %v503 = vsel %vm502, %v486, 0.0
    %504 = vadd.xlane.f32.xlu0 %v503
    %v505 = vpop.xlane.xlu0 %504
    %v506 = vsel %vm502, %v487, 0.0
    %507 = vadd.xlane.f32.xlu0 %v506
    %v508 = vpop.xlane.xlu0 %507
    %v509 = vadd.f32 %v505, %v508
    %v510 = vrot.slane %v509, 4
    %v511 = vadd.f32 %v509, %v510
    %v512 = vrot.slane %v511, 2
    %v513 = vadd.f32 %v511, %v512
    %v514 = vrot.slane %v513, 1
    %v515 = vadd.f32 %v513, %v514
    %v516 = vadd.f32 %v515, 0.0
    %v517 = vmul.f32 %v486, %v486
    %v518 = vmul.f32 %v487, %v487
    %v519 = vsel %vm502, %v517, 0.0
    %520 = vadd.xlane.f32.xlu0 %v519
    %v521 = vpop.xlane.xlu0 %520
    %v522 = vsel %vm502, %v518, 0.0
    %523 = vadd.xlane.f32.xlu0 %v522
    %v524 = vpop.xlane.xlu0 %523
    %v525 = vadd.f32 %v521, %v524
    %v526 = vrot.slane %v525, 4
    %v527 = vadd.f32 %v525, %v526
    %v528 = vrot.slane %v527, 2
    %v529 = vadd.f32 %v527, %v528
    %v530 = vrot.slane %v529, 1
    %v531 = vadd.f32 %v529, %v530
    %v532 = vadd.f32 %v531, 0.0
    %v533 = vsel %vm502, %v500, 0.0
    %534 = vadd.xlane.f32.xlu0 %v533
    %v535 = vpop.xlane.xlu0 %534
    %v536 = vsel %vm502, %v501, 0.0
    %537 = vadd.xlane.f32.xlu0 %v536
    %v538 = vpop.xlane.xlu0 %537
    %v539 = vadd.f32 %v535, %v538
    %v540 = vrot.slane %v539, 4
    %v541 = vadd.f32 %v539, %v540
    %v542 = vrot.slane %v541, 2
    %v543 = vadd.f32 %v541, %v542
    %v544 = vrot.slane %v543, 1
    %v545 = vadd.f32 %v543, %v544
    %v546 = vadd.f32 %v545, 0.0
    %v547 = vmul.f32 %v500, %v500
    %v548 = vmul.f32 %v501, %v501
    %v549 = vsel %vm502, %v547, 0.0
    %550 = vadd.xlane.f32.xlu0 %v549
    %v551 = vpop.xlane.xlu0 %550
    %v552 = vsel %vm502, %v548, 0.0
    %553 = vadd.xlane.f32.xlu0 %v552
    %v554 = vpop.xlane.xlu0 %553
    %v555 = vadd.f32 %v551, %v554
    %v556 = vrot.slane %v555, 4
    %v557 = vadd.f32 %v555, %v556
    %v558 = vrot.slane %v557, 2
    %v559 = vadd.f32 %v557, %v558
    %v560 = vrot.slane %v559, 1
    %v561 = vadd.f32 %v559, %v560
    %v562 = vadd.f32 %v561, 0.0
    %s563 = scalar_lea.vmem [#allocation3], 32
    %v564 = vld [vmem:[%s563] sm:$0xff]
    %v565 = vld [vmem:[%s563 + $0x8] sm:$0xff]
    %v566 = vld [vmem:[%s563 + $0x10] sm:$0xff]
    %v567 = vld [vmem:[%s563 + $0x18] sm:$0xff]
    %572 = vrot.lane.b32.xlu0 %v564, 1
    %v573 = vpop.permute.xlu0 %572
    %574 = vrot.lane.b32.xlu0 %v565, 1
    %v575 = vpop.permute.xlu0 %574
    %576 = vrot.lane.b32.xlu0 %v566, 1
    %v577 = vpop.permute.xlu0 %576
    %578 = vrot.lane.b32.xlu0 %v567, 1
    %v579 = vpop.permute.xlu0 %578
    %584 = vst.msk [vmem:[#allocation2 + $0x1] sm:$0xff] %vm76, %v573
    %585 = vst.msk [vmem:[#allocation2 + $0x9] sm:$0xff] %vm76, %v575
    %586 = vst.msk [vmem:[#allocation2 + $0x19] sm:$0xff] %vm76, %v577
    %587 = vst.msk [vmem:[#allocation2 + $0x21] sm:$0xff] %vm76, %v579
    %v588 = vld [vmem:[#allocation2] sm:$0xff]
    %v589 = vld [vmem:[#allocation2 + $0x8] sm:$0xff]
    %s590 = sld [smem:[#allocation7]]
    %v591 = vstv %s590
    %v592 = vmul.f32 %v588, %v591
    %v593 = vmul.f32 %v589, %v591
    %v594 = vadd.f32 %v592, 0.0
    %v595 = vadd.f32 %v593, 0.0
    %s596 = sld [smem:[#allocation7 + $0x1]]
    %v597 = vstv %s596
    %v598 = vmul.f32 %v588, %v597
    %v599 = vmul.f32 %v589, %v597
    %v600 = vadd.f32 %v598, 0.0
    %v601 = vadd.f32 %v599, 0.0
    %s602 = sld [smem:[#allocation7 + $0x4]]
    %v603 = vstv %s602
    %v604 = vmul.f32 %v588, %v603
    %v605 = vmul.f32 %v589, %v603
    %608 = vrot.lane.b32.xlu0 %v604, 127
    %v609 = vpop.permute.xlu0 %608
    %610 = vrot.lane.b32.xlu0 %v605, 127
    %v611 = vpop.permute.xlu0 %610
    %v614 = vadd.f32 %v594, %v609
    %v615 = vadd.f32 %v595, %v611
    %s616 = sld [smem:[#allocation7 + $0x5]]
    %v617 = vstv %s616
    %v618 = vmul.f32 %v588, %v617
    %v619 = vmul.f32 %v589, %v617
    %622 = vrot.lane.b32.xlu0 %v618, 127
    %v623 = vpop.permute.xlu0 %622
    %624 = vrot.lane.b32.xlu0 %v619, 127
    %v625 = vpop.permute.xlu0 %624
    %v628 = vadd.f32 %v600, %v623
    %v629 = vadd.f32 %v601, %v625
    %s630 = sld [smem:[#allocation7 + $0x8]]
    %v631 = vstv %s630
    %v632 = vmul.f32 %v588, %v631
    %v633 = vmul.f32 %v589, %v631
    %636 = vrot.lane.b32.xlu0 %v632, 126
    %v637 = vpop.permute.xlu0 %636
    %638 = vrot.lane.b32.xlu0 %v633, 126
    %v639 = vpop.permute.xlu0 %638
    %v642 = vadd.f32 %v614, %v637
    %v643 = vadd.f32 %v615, %v639
    %s644 = sld [smem:[#allocation7 + $0x9]]
    %v645 = vstv %s644
    %v646 = vmul.f32 %v588, %v645
    %v647 = vmul.f32 %v589, %v645
    %650 = vrot.lane.b32.xlu0 %v646, 126
    %v651 = vpop.permute.xlu0 %650
    %652 = vrot.lane.b32.xlu0 %v647, 126
    %v653 = vpop.permute.xlu0 %652
    %v656 = vadd.f32 %v628, %v651
    %v657 = vadd.f32 %v629, %v653
    %v658 = vld [vmem:[#allocation2 + $0x1] sm:$0xff]
    %v659 = vld [vmem:[#allocation2 + $0x9] sm:$0xff]
    %s660 = sld [smem:[#allocation7 + $0xc]]
    %v661 = vstv %s660
    %v662 = vmul.f32 %v658, %v661
    %v663 = vmul.f32 %v659, %v661
    %v664 = vadd.f32 %v642, %v662
    %v665 = vadd.f32 %v643, %v663
    %s666 = sld [smem:[#allocation7 + $0xd]]
    %v667 = vstv %s666
    %v668 = vmul.f32 %v658, %v667
    %v669 = vmul.f32 %v659, %v667
    %v670 = vadd.f32 %v656, %v668
    %v671 = vadd.f32 %v657, %v669
    %s672 = sld [smem:[#allocation7 + $0x10]]
    %v673 = vstv %s672
    %v674 = vmul.f32 %v658, %v673
    %v675 = vmul.f32 %v659, %v673
    %678 = vrot.lane.b32.xlu0 %v674, 127
    %v679 = vpop.permute.xlu0 %678
    %680 = vrot.lane.b32.xlu0 %v675, 127
    %v681 = vpop.permute.xlu0 %680
    %v684 = vadd.f32 %v664, %v679
    %v685 = vadd.f32 %v665, %v681
    %s686 = sld [smem:[#allocation7 + $0x11]]
    %v687 = vstv %s686
    %v688 = vmul.f32 %v658, %v687
    %v689 = vmul.f32 %v659, %v687
    %692 = vrot.lane.b32.xlu0 %v688, 127
    %v693 = vpop.permute.xlu0 %692
    %694 = vrot.lane.b32.xlu0 %v689, 127
    %v695 = vpop.permute.xlu0 %694
    %v698 = vadd.f32 %v670, %v693
    %v699 = vadd.f32 %v671, %v695
    %s700 = sld [smem:[#allocation7 + $0x14]]
    %v701 = vstv %s700
    %v702 = vmul.f32 %v658, %v701
    %v703 = vmul.f32 %v659, %v701
    %706 = vrot.lane.b32.xlu0 %v702, 126
    %v707 = vpop.permute.xlu0 %706
    %708 = vrot.lane.b32.xlu0 %v703, 126
    %v709 = vpop.permute.xlu0 %708
    %v712 = vadd.f32 %v684, %v707
    %v713 = vadd.f32 %v685, %v709
    %s714 = sld [smem:[#allocation7 + $0x15]]
    %v715 = vstv %s714
    %v716 = vmul.f32 %v658, %v715
    %v717 = vmul.f32 %v659, %v715
    %720 = vrot.lane.b32.xlu0 %v716, 126
    %v721 = vpop.permute.xlu0 %720
    %722 = vrot.lane.b32.xlu0 %v717, 126
    %v723 = vpop.permute.xlu0 %722
    %v726 = vadd.f32 %v698, %v721
    %v727 = vadd.f32 %v699, %v723
    %v728 = vld [vmem:[#allocation2 + $0x2] sm:$0xff]
    %v729 = vld [vmem:[#allocation2 + $0xa] sm:$0xff]
    %s730 = sld [smem:[#allocation7 + $0x18]]
    %v731 = vstv %s730
    %v732 = vmul.f32 %v728, %v731
    %v733 = vmul.f32 %v729, %v731
    %v734 = vadd.f32 %v712, %v732
    %v735 = vadd.f32 %v713, %v733
    %s736 = sld [smem:[#allocation7 + $0x19]]
    %v737 = vstv %s736
    %v738 = vmul.f32 %v728, %v737
    %v739 = vmul.f32 %v729, %v737
    %v740 = vadd.f32 %v726, %v738
    %v741 = vadd.f32 %v727, %v739
    %s742 = sld [smem:[#allocation7 + $0x1c]]
    %v743 = vstv %s742
    %v744 = vmul.f32 %v728, %v743
    %v745 = vmul.f32 %v729, %v743
    %748 = vrot.lane.b32.xlu0 %v744, 127
    %v749 = vpop.permute.xlu0 %748
    %750 = vrot.lane.b32.xlu0 %v745, 127
    %v751 = vpop.permute.xlu0 %750
    %v754 = vadd.f32 %v734, %v749
    %v755 = vadd.f32 %v735, %v751
    %s756 = sld [smem:[#allocation7 + $0x1d]]
    %v757 = vstv %s756
    %v758 = vmul.f32 %v728, %v757
    %v759 = vmul.f32 %v729, %v757
    %762 = vrot.lane.b32.xlu0 %v758, 127
    %v763 = vpop.permute.xlu0 %762
    %764 = vrot.lane.b32.xlu0 %v759, 127
    %v765 = vpop.permute.xlu0 %764
    %v768 = vadd.f32 %v740, %v763
    %v769 = vadd.f32 %v741, %v765
    %s770 = sld [smem:[#allocation7 + $0x20]]
    %v771 = vstv %s770
    %v772 = vmul.f32 %v728, %v771
    %v773 = vmul.f32 %v729, %v771
    %776 = vrot.lane.b32.xlu0 %v772, 126
    %v777 = vpop.permute.xlu0 %776
    %778 = vrot.lane.b32.xlu0 %v773, 126
    %v779 = vpop.permute.xlu0 %778
    %v782 = vadd.f32 %v754, %v777
    %v783 = vadd.f32 %v755, %v779
    %s784 = sld [smem:[#allocation7 + $0x21]]
    %v785 = vstv %s784
    %v786 = vmul.f32 %v728, %v785
    %v787 = vmul.f32 %v729, %v785
    %790 = vrot.lane.b32.xlu0 %v786, 126
    %v791 = vpop.permute.xlu0 %790
    %792 = vrot.lane.b32.xlu0 %v787, 126
    %v793 = vpop.permute.xlu0 %792
    %v796 = vadd.f32 %v768, %v791
    %v797 = vadd.f32 %v769, %v793
    %v798 = vld [vmem:[%s291] sm:$0xff]
    %v799 = vld [vmem:[%s291 + $0x8] sm:$0xff]
    %s800 = sld [smem:[#allocation7 + $0x2]]
    %v801 = vstv %s800
    %v802 = vmul.f32 %v798, %v801
    %v803 = vmul.f32 %v799, %v801
    %v804 = vadd.f32 %v782, %v802
    %v805 = vadd.f32 %v783, %v803
    %s806 = sld [smem:[#allocation7 + $0x3]]
    %v807 = vstv %s806
    %v808 = vmul.f32 %v798, %v807
    %v809 = vmul.f32 %v799, %v807
    %v810 = vadd.f32 %v796, %v808
    %v811 = vadd.f32 %v797, %v809
    %s812 = sld [smem:[#allocation7 + $0x6]]
    %v813 = vstv %s812
    %v814 = vmul.f32 %v798, %v813
    %v815 = vmul.f32 %v799, %v813
    %818 = vrot.lane.b32.xlu0 %v814, 127
    %v819 = vpop.permute.xlu0 %818
    %820 = vrot.lane.b32.xlu0 %v815, 127
    %v821 = vpop.permute.xlu0 %820
    %v824 = vadd.f32 %v804, %v819
    %v825 = vadd.f32 %v805, %v821
    %s826 = sld [smem:[#allocation7 + $0x7]]
    %v827 = vstv %s826
    %v828 = vmul.f32 %v798, %v827
    %v829 = vmul.f32 %v799, %v827
    %832 = vrot.lane.b32.xlu0 %v828, 127
    %v833 = vpop.permute.xlu0 %832
    %834 = vrot.lane.b32.xlu0 %v829, 127
    %v835 = vpop.permute.xlu0 %834
    %v838 = vadd.f32 %v810, %v833
    %v839 = vadd.f32 %v811, %v835
    %s840 = sld [smem:[#allocation7 + $0xa]]
    %v841 = vstv %s840
    %v842 = vmul.f32 %v798, %v841
    %v843 = vmul.f32 %v799, %v841
    %846 = vrot.lane.b32.xlu0 %v842, 126
    %v847 = vpop.permute.xlu0 %846
    %848 = vrot.lane.b32.xlu0 %v843, 126
    %v849 = vpop.permute.xlu0 %848
    %v852 = vadd.f32 %v824, %v847
    %v853 = vadd.f32 %v825, %v849
    %s854 = sld [smem:[#allocation7 + $0xb]]
    %v855 = vstv %s854
    %v856 = vmul.f32 %v798, %v855
    %v857 = vmul.f32 %v799, %v855
    %860 = vrot.lane.b32.xlu0 %v856, 126
    %v861 = vpop.permute.xlu0 %860
    %862 = vrot.lane.b32.xlu0 %v857, 126
    %v863 = vpop.permute.xlu0 %862
    %v866 = vadd.f32 %v838, %v861
    %v867 = vadd.f32 %v839, %v863
    %v868 = vld [vmem:[%s291 + $0x1] sm:$0xff]
    %v869 = vld [vmem:[%s291 + $0x9] sm:$0xff]
    %s870 = sld [smem:[#allocation7 + $0xe]]
    %v871 = vstv %s870
    %v872 = vmul.f32 %v868, %v871
    %v873 = vmul.f32 %v869, %v871
    %v874 = vadd.f32 %v852, %v872
    %v875 = vadd.f32 %v853, %v873
    %s876 = sld [smem:[#allocation7 + $0xf]]
    %v877 = vstv %s876
    %v878 = vmul.f32 %v868, %v877
    %v879 = vmul.f32 %v869, %v877
    %v880 = vadd.f32 %v866, %v878
    %v881 = vadd.f32 %v867, %v879
    %s882 = sld [smem:[#allocation7 + $0x12]]
    %v883 = vstv %s882
    %v884 = vmul.f32 %v868, %v883
    %v885 = vmul.f32 %v869, %v883
    %888 = vrot.lane.b32.xlu0 %v884, 127
    %v889 = vpop.permute.xlu0 %888
    %890 = vrot.lane.b32.xlu0 %v885, 127
    %v891 = vpop.permute.xlu0 %890
    %v894 = vadd.f32 %v874, %v889
    %v895 = vadd.f32 %v875, %v891
    %s896 = sld [smem:[#allocation7 + $0x13]]
    %v897 = vstv %s896
    %v898 = vmul.f32 %v868, %v897
    %v899 = vmul.f32 %v869, %v897
    %902 = vrot.lane.b32.xlu0 %v898, 127
    %v903 = vpop.permute.xlu0 %902
    %904 = vrot.lane.b32.xlu0 %v899, 127
    %v905 = vpop.permute.xlu0 %904
    %v908 = vadd.f32 %v880, %v903
    %v909 = vadd.f32 %v881, %v905
    %s910 = sld [smem:[#allocation7 + $0x16]]
    %v911 = vstv %s910
    %v912 = vmul.f32 %v868, %v911
    %v913 = vmul.f32 %v869, %v911
    %916 = vrot.lane.b32.xlu0 %v912, 126
    %v917 = vpop.permute.xlu0 %916
    %918 = vrot.lane.b32.xlu0 %v913, 126
    %v919 = vpop.permute.xlu0 %918
    %v922 = vadd.f32 %v894, %v917
    %v923 = vadd.f32 %v895, %v919
    %s924 = sld [smem:[#allocation7 + $0x17]]
    %v925 = vstv %s924
    %v926 = vmul.f32 %v868, %v925
    %v927 = vmul.f32 %v869, %v925
    %930 = vrot.lane.b32.xlu0 %v926, 126
    %v931 = vpop.permute.xlu0 %930
    %932 = vrot.lane.b32.xlu0 %v927, 126
    %v933 = vpop.permute.xlu0 %932
    %v936 = vadd.f32 %v908, %v931
    %v937 = vadd.f32 %v909, %v933
    %v938 = vld [vmem:[%s291 + $0x2] sm:$0xff]
    %v939 = vld [vmem:[%s291 + $0xa] sm:$0xff]
    %s940 = sld [smem:[#allocation7 + $0x1a]]
    %v941 = vstv %s940
    %v942 = vmul.f32 %v938, %v941
    %v943 = vmul.f32 %v939, %v941
    %v944 = vadd.f32 %v922, %v942
    %v945 = vadd.f32 %v923, %v943
    %s946 = sld [smem:[#allocation7 + $0x1b]]
    %v947 = vstv %s946
    %v948 = vmul.f32 %v938, %v947
    %v949 = vmul.f32 %v939, %v947
    %v950 = vadd.f32 %v936, %v948
    %v951 = vadd.f32 %v937, %v949
    %s952 = sld [smem:[#allocation7 + $0x1e]]
    %v953 = vstv %s952
    %v954 = vmul.f32 %v938, %v953
    %v955 = vmul.f32 %v939, %v953
    %958 = vrot.lane.b32.xlu0 %v954, 127
    %v959 = vpop.permute.xlu0 %958
    %960 = vrot.lane.b32.xlu0 %v955, 127
    %v961 = vpop.permute.xlu0 %960
    %v964 = vadd.f32 %v944, %v959
    %v965 = vadd.f32 %v945, %v961
    %s966 = sld [smem:[#allocation7 + $0x1f]]
    %v967 = vstv %s966
    %v968 = vmul.f32 %v938, %v967
    %v969 = vmul.f32 %v939, %v967
    %972 = vrot.lane.b32.xlu0 %v968, 127
    %v973 = vpop.permute.xlu0 %972
    %974 = vrot.lane.b32.xlu0 %v969, 127
    %v975 = vpop.permute.xlu0 %974
    %v978 = vadd.f32 %v950, %v973
    %v979 = vadd.f32 %v951, %v975
    %s980 = sld [smem:[#allocation7 + $0x22]]
    %v981 = vstv %s980
    %v982 = vmul.f32 %v938, %v981
    %v983 = vmul.f32 %v939, %v981
    %986 = vrot.lane.b32.xlu0 %v982, 126
    %v987 = vpop.permute.xlu0 %986
    %988 = vrot.lane.b32.xlu0 %v983, 126
    %v989 = vpop.permute.xlu0 %988
    %v992 = vadd.f32 %v964, %v987
    %v993 = vadd.f32 %v965, %v989
    %s994 = sld [smem:[#allocation7 + $0x23]]
    %v995 = vstv %s994
    %v996 = vmul.f32 %v938, %v995
    %v997 = vmul.f32 %v939, %v995
    %1000 = vrot.lane.b32.xlu0 %v996, 126
    %v1001 = vpop.permute.xlu0 %1000
    %1002 = vrot.lane.b32.xlu0 %v997, 126
    %v1003 = vpop.permute.xlu0 %1002
    %v1006 = vadd.f32 %v978, %v1001
    %v1007 = vadd.f32 %v979, %v1003
    %v1008 = vsel %vm502, %v992, 0.0
    %1009 = vadd.xlane.f32.xlu0 %v1008
    %v1010 = vpop.xlane.xlu0 %1009
    %v1011 = vsel %vm502, %v993, 0.0
    %1012 = vadd.xlane.f32.xlu0 %v1011
    %v1013 = vpop.xlane.xlu0 %1012
    %v1014 = vadd.f32 %v1010, %v1013
    %v1015 = vrot.slane %v1014, 4
    %v1016 = vadd.f32 %v1014, %v1015
    %v1017 = vrot.slane %v1016, 2
    %v1018 = vadd.f32 %v1016, %v1017
    %v1019 = vrot.slane %v1018, 1
    %v1020 = vadd.f32 %v1018, %v1019
    %v1021 = vadd.f32 %v516, %v1020
    %v1022 = vmul.f32 %v992, %v992
    %v1023 = vmul.f32 %v993, %v993
    %v1024 = vsel %vm502, %v1022, 0.0
    %1025 = vadd.xlane.f32.xlu0 %v1024
    %v1026 = vpop.xlane.xlu0 %1025
    %v1027 = vsel %vm502, %v1023, 0.0
    %1028 = vadd.xlane.f32.xlu0 %v1027
    %v1029 = vpop.xlane.xlu0 %1028
    %v1030 = vadd.f32 %v1026, %v1029
    %v1031 = vrot.slane %v1030, 4
    %v1032 = vadd.f32 %v1030, %v1031
    %v1033 = vrot.slane %v1032, 2
    %v1034 = vadd.f32 %v1032, %v1033
    %v1035 = vrot.slane %v1034, 1
    %v1036 = vadd.f32 %v1034, %v1035
    %v1037 = vadd.f32 %v532, %v1036
    %v1038 = vsel %vm502, %v1006, 0.0
    %1039 = vadd.xlane.f32.xlu0 %v1038
    %v1040 = vpop.xlane.xlu0 %1039
    %v1041 = vsel %vm502, %v1007, 0.0
    %1042 = vadd.xlane.f32.xlu0 %v1041
    %v1043 = vpop.xlane.xlu0 %1042
    %v1044 = vadd.f32 %v1040, %v1043
    %v1045 = vrot.slane %v1044, 4
    %v1046 = vadd.f32 %v1044, %v1045
    %v1047 = vrot.slane %v1046, 2
    %v1048 = vadd.f32 %v1046, %v1047
    %v1049 = vrot.slane %v1048, 1
    %v1050 = vadd.f32 %v1048, %v1049
    %v1051 = vadd.f32 %v546, %v1050
    %v1052 = vmul.f32 %v1006, %v1006
    %v1053 = vmul.f32 %v1007, %v1007
    %v1054 = vsel %vm502, %v1052, 0.0
    %1055 = vadd.xlane.f32.xlu0 %v1054
    %v1056 = vpop.xlane.xlu0 %1055
    %v1057 = vsel %vm502, %v1053, 0.0
    %1058 = vadd.xlane.f32.xlu0 %v1057
    %v1059 = vpop.xlane.xlu0 %1058
    %v1060 = vadd.f32 %v1056, %v1059
    %v1061 = vrot.slane %v1060, 4
    %v1062 = vadd.f32 %v1060, %v1061
    %v1063 = vrot.slane %v1062, 2
    %v1064 = vadd.f32 %v1062, %v1063
    %v1065 = vrot.slane %v1064, 1
    %v1066 = vadd.f32 %v1064, %v1065
    %v1067 = vadd.f32 %v562, %v1066
    %vm1068 = vcmask 0
    %1069 = vst.msk [vmem:[#allocation8] sm:$0x1] %vm1068, %v1021
    %1070 = vst.msk [vmem:[#allocation8 + $0x1] sm:$0x1] %vm1068, %v1037
    %vm1071 = vcmask 8200
    %1072 = vst.msk [vmem:[#allocation8] sm:$0x1] %vm1071, %v1051
    %1073 = vst.msk [vmem:[#allocation8 + $0x1] sm:$0x1] %vm1071, %v1067
    // Predicated region
    $region18: #{tpu_custom_call.1} parent=1 // pred_check
      _
    $region19: #{tpu_custom_call.1} parent=1 // pred_check_branch
      %1075 = sbr.rel (0) target = $region21
    $region20: #{tpu_custom_call.1} parent=1 // pred_region
      %1077 = vsyncadd [#allocation5], 0
      %s1079 = sshll.u32 [#allocation8], 4
      %s1080 = int_to_ptr.vmem [resolvable:$true] %s1079
      %s1081 = sshll.u32 %s2, 4
      %s1082 = int_to_ptr.hbm [resolvable:$true] %s1081
      %1084 = dma.vmem_to_hbm [thread:$0]  %s1080, 32, %s1082, [#allocation5]
    $region21: #{tpu_custom_call.1} parent=1 // pred_fallthru
      _
    // Predicated region
    $region22: #{tpu_custom_call.1} parent=1 // pred_check
      _
    $region23: #{tpu_custom_call.1} parent=1 // pred_check_branch
      %1086 = sbr.rel (0) target = $region25
    $region24: #{tpu_custom_call.1} parent=1 // pred_region
      %1088 = dma.done [#allocation5], 32
    $region25: #{tpu_custom_call.1} parent=1 // pred_fallthru
      _
    %1089 = vsyncpa [#allocation4], 1
    %1090 = vsyncpa [#allocation5], 1
    %1091 = vsyncpa [#allocation6], 1

</llo_original>
